<compile_context>
chip_gen: v5e
topology: v5e:2x2
jax: 0.10.0
libtpu: 0.0.40
codegen_flags: <defaults>
</compile_context>

<pallas_src>
import math
from functools import partial

import jax
import jax.numpy as jnp
from jax.experimental import pallas as pl
from jax.experimental.pallas import tpu as pltpu

LN_EPS = 1e-5                    # PyTorch nn.LayerNorm default eps
NEG_INF = -1e30                  # finite mask value
VMEM_LIMIT = 32 * 1024 * 1024    # safe on v5e/v6e (128 MiB) and v7x (64 MiB)


def _layernorm(x, w, b):
    x = x.astype(jnp.float32)
    mu = jnp.mean(x, axis=-1, keepdims=True)
    var = jnp.mean(jnp.square(x - mu), axis=-1, keepdims=True)
    return (x - mu) * jax.lax.rsqrt(var + LN_EPS) * w + b


# ----------------------- fused all-layers block kernel -----------------------
def _blocks_kernel(num_heads,
                   x_ref,
                   ln1_w, ln1_b, wqkv, bqkv, wproj, bproj,
                   ln2_w, ln2_b, wfc, bfc, wpr2, bpr2,
                   out_ref):
    layer = pl.program_id(1)

    # Layer 0: seed the VMEM-resident activation from the embedding input.
    @pl.when(layer == 0)
    def _():
        out_ref[...] = x_ref[...]

    x = out_ref[...].astype(jnp.float32)            # (T, C) carried activation
    T, C = x.shape
    H = num_heads
    hd = C // H
    scale = 1.0 / math.sqrt(hd)
    bf16 = jnp.bfloat16

    # ---------------- causal self-attention ----------------
    h = _layernorm(x, ln1_w[...], ln1_b[...])
    qkv = jnp.dot(h.astype(bf16), wqkv[...],
                  preferred_element_type=jnp.float32) + bqkv[...]    # (T, 3C)

    def split_heads(z):  # (T, C) f32 -> (H, T, hd) bf16, heads on batch axis
        return jnp.stack([z[:, i * hd:(i + 1) * hd] for i in range(H)],
                         axis=0).astype(bf16)

    q = split_heads(qkv[:, 0 * C:1 * C])
    k = split_heads(qkv[:, 1 * C:2 * C])
    v = split_heads(qkv[:, 2 * C:3 * C])

    # TODO(synk): for long sequences switch to a flash-style KV-tiled loop with
    # online softmax instead of materializing the full (H, T, T) score tensor.
    s = jnp.einsum('hqd,hkd->hqk', q, k,
                   preferred_element_type=jnp.float32) * scale       # (H, T, T)
    rows = jax.lax.broadcasted_iota(jnp.int32, (T, T), 0)
    cols = jax.lax.broadcasted_iota(jnp.int32, (T, T), 1)
    s = jnp.where((cols <= rows)[None, :, :], s, NEG_INF)
    s_max = jnp.max(s, axis=-1, keepdims=True)
    e = jnp.exp(s - s_max)
    p = e * pl.reciprocal(jnp.sum(e, axis=-1, keepdims=True), approx=True)

    yh = jnp.einsum('hqk,hkd->hqd', p.astype(bf16), v,
                    preferred_element_type=jnp.float32)              # (H, T, hd)
    y = jnp.concatenate([yh[i] for i in range(H)], axis=-1)          # (T, C)
    y = jnp.dot(y.astype(bf16), wproj[...],
                preferred_element_type=jnp.float32) + bproj[...]
    x = x + y                                        # residual (dropout p=0.0)

    # ------------------------- MLP --------------------------
    h2 = _layernorm(x, ln2_w[...], ln2_b[...])
    m = jnp.dot(h2.astype(bf16), wfc[...],
                preferred_element_type=jnp.float32) + bfc[...]
    m = 0.5 * m * (1.0 + jax.lax.erf(m * (1.0 / math.sqrt(2.0))))    # exact GELU
    m = jnp.dot(m.astype(bf16), wpr2[...],
                preferred_element_type=jnp.float32) + bpr2[...]

    out_ref[...] = (x + m).astype(out_ref.dtype)


def transformer_blocks(x, sp, num_heads):
    """Run ALL transformer layers in one pallas_call.

    x  : (B, T, C) float32 activations
    sp : dict of layer-stacked params, each with leading dim = num_layers
    """
    B, T, C = x.shape

    weight_args = (sp['ln1_w'], sp['ln1_b'], sp['w_qkv'], sp['b_qkv'],
                   sp['w_proj'], sp['b_proj'], sp['ln2_w'], sp['ln2_b'],
                   sp['w_fc'], sp['b_fc'], sp['w_pr2'], sp['b_pr2'])
    L = sp['w_qkv'].shape[0]

    def wspec(a):
        rest = a.shape[1:]          # (L, *rest): layer axis squeezed away
        return pl.BlockSpec((None,) + rest,
                            lambda b, l, _n=len(rest): (l,) + (0,) * _n)

    return pl.pallas_call(
        partial(_blocks_kernel, num_heads),
        out_shape=jax.ShapeDtypeStruct((B, T, C), jnp.float32),
        grid=(B, L),
        in_specs=[pl.BlockSpec((None, T, C), lambda b, l: (b, 0, 0))]
                 + [wspec(a) for a in weight_args],
        out_specs=pl.BlockSpec((None, T, C), lambda b, l: (b, 0, 0)),
        compiler_params=pltpu.CompilerParams(
            dimension_semantics=("parallel", "arbitrary"),
            vmem_limit_bytes=VMEM_LIMIT),
    )(x, *weight_args)


# -------------------- final layernorm + vocab-tiled lm_head -------------------
def _head_kernel(y_ref, lnf_w, lnf_b, wlm, out_ref):
    h = _layernorm(y_ref[...], lnf_w[...], lnf_b[...])        # (B, C) f32
    out_ref[...] = jnp.dot(h.astype(jnp.bfloat16), wlm[...],
                           preferred_element_type=jnp.float32)


def lm_head(y_last, lnf_w, lnf_b, w_lm):
    B, C = y_last.shape
    V = w_lm.shape[1]
    tile_v = V
    for t in (2048, 1024, 512, 256, 128):      # largest 128-multiple tile
        if V % t == 0:
            tile_v = t
            break

    return pl.pallas_call(
        _head_kernel,
        out_shape=jax.ShapeDtypeStruct((B, V), jnp.float32),
        grid=(V // tile_v,),
        in_specs=[pl.BlockSpec((B, C), lambda v: (0, 0)),
                  pl.BlockSpec((1, C), lambda v: (0, 0)),
                  pl.BlockSpec((1, C), lambda v: (0, 0)),
                  pl.BlockSpec((C, tile_v), lambda v: (0, v))],
        out_specs=pl.BlockSpec((B, tile_v), lambda v: (0, v)),
        compiler_params=pltpu.CompilerParams(
            dimension_semantics=("parallel",),
            vmem_limit_bytes=VMEM_LIMIT),
    )(y_last, lnf_w, lnf_b, w_lm)


# --------------------------------- forward -----------------------------------
def transformer_forward(token_ids, params, num_heads):
    # embedding gather is glue (plain JAX)
    tok = jnp.take(params['token_emb'], token_ids, axis=0)     # (B, T, C)
    # NB: reference forward uses token_emb for pos_embed too => y = 2 * tok
    y = tok + tok                                              # dropout p=0.0
    y = transformer_blocks(y, params['blocks'], num_heads)
    logits = lm_head(y[:, -1, :], params['lnf_w'], params['lnf_b'],
                     params['w_lm'])                           # (B, V)
    return logits[:, None, :]                                  # (B, 1, V)


# ------------------------------ parameter init --------------------------------
def init_params(key, vocab_size, block_size, num_layers, embed_dim):
    C, L = embed_dim, num_layers
    keys = jax.random.split(key, 6)

    def w(k, shape, scale=0.02, dtype=jnp.bfloat16):
        return (scale * jax.random.normal(k, shape, dtype=jnp.float32)).astype(dtype)

    return {
        'token_emb': w(keys[0], (vocab_size, C), dtype=jnp.float32),
        # pos_emb exists in the module but forward re-uses token_emb; unused.
        'lnf_w': jnp.ones((1, C), jnp.float32),
        'lnf_b': jnp.zeros((1, C), jnp.float32),
        'w_lm': w(keys[1], (C, vocab_size)),          # bf16, (in, out) layout
        'blocks': {                                   # layer-stacked weights
            'ln1_w': jnp.ones((L, 1, C), jnp.float32),
            'ln1_b': jnp.zeros((L, 1, C), jnp.float32),
            'w_qkv': w(keys[2], (L, C, 3 * C)),
            'b_qkv': jnp.zeros((L, 1, 3 * C), jnp.float32),
            'w_proj': w(keys[3], (L, C, C)),
            'b_proj': jnp.zeros((L, 1, C), jnp.float32),
            'ln2_w': jnp.ones((L, 1, C), jnp.float32),
            'ln2_b': jnp.zeros((L, 1, C), jnp.float32),
            'w_fc': w(keys[4], (L, C, 4 * C)),
            'b_fc': jnp.zeros((L, 1, 4 * C), jnp.float32),
            'w_pr2': w(keys[5], (L, 4 * C, C)),
            'b_pr2': jnp.zeros((L, 1, C), jnp.float32),
        },
    }


if __name__ == "__main__":
    # small config consistent with the module
    vocab_size = 128
    block_size = 16
    num_layers = 2
    num_heads = 4
    embed_dim = 32
    B, T = 2, 8

    key = jax.random.PRNGKey(0)
    kp, kx = jax.random.split(key)
    params = init_params(kp, vocab_size, block_size, num_layers, embed_dim)
    token_ids = jax.random.randint(kx, (B, T), 0, vocab_size, dtype=jnp.int32)

    fwd = jax.jit(partial(transformer_forward, num_heads=num_heads))
    logits = fwd(token_ids, params)
    logits = jax.block_until_ready(logits)
    assert logits.shape == (B, 1, vocab_size), logits.shape
    assert bool(jnp.all(jnp.isfinite(logits)))
    print("KERNEL_OK")
</pallas_src>

<mosaic_0001>
module attributes {stable_mosaic.version = 11 : i64} {
  func.func @_blocks_kernel(%arg0: i32, %arg1: i32, %arg2: memref<1x8x32xf32, #tpu.memory_space<vmem>>, %arg3: memref<1x1x32xf32, #tpu.memory_space<vmem>>, %arg4: memref<1x1x32xf32, #tpu.memory_space<vmem>>, %arg5: memref<1x32x96xbf16, #tpu.memory_space<vmem>>, %arg6: memref<1x1x96xf32, #tpu.memory_space<vmem>>, %arg7: memref<1x32x32xbf16, #tpu.memory_space<vmem>>, %arg8: memref<1x1x32xf32, #tpu.memory_space<vmem>>, %arg9: memref<1x1x32xf32, #tpu.memory_space<vmem>>, %arg10: memref<1x1x32xf32, #tpu.memory_space<vmem>>, %arg11: memref<1x32x128xbf16, #tpu.memory_space<vmem>>, %arg12: memref<1x1x128xf32, #tpu.memory_space<vmem>>, %arg13: memref<1x128x32xbf16, #tpu.memory_space<vmem>>, %arg14: memref<1x1x32xf32, #tpu.memory_space<vmem>>, %arg15: memref<1x8x32xf32, #tpu.memory_space<vmem>>) attributes {dimension_semantics = [#tpu.dimension_semantics<parallel>, #tpu.dimension_semantics<arbitrary>], iteration_bounds = array<i64: 2, 2>, scalar_prefetch = 0 : i64, scratch_operands = 0 : i64, tpu.core_type = #tpu.core_type<tc>, window_params = [{transform_indices = @transform_0, window_bounds = array<i64: 1, 8, 32>}, {transform_indices = @transform_1, window_bounds = array<i64: 1, 1, 32>}, {transform_indices = @transform_2, window_bounds = array<i64: 1, 1, 32>}, {transform_indices = @transform_3, window_bounds = array<i64: 1, 32, 96>}, {transform_indices = @transform_4, window_bounds = array<i64: 1, 1, 96>}, {transform_indices = @transform_5, window_bounds = array<i64: 1, 32, 32>}, {transform_indices = @transform_6, window_bounds = array<i64: 1, 1, 32>}, {transform_indices = @transform_7, window_bounds = array<i64: 1, 1, 32>}, {transform_indices = @transform_8, window_bounds = array<i64: 1, 1, 32>}, {transform_indices = @transform_9, window_bounds = array<i64: 1, 32, 128>}, {transform_indices = @transform_10, window_bounds = array<i64: 1, 1, 128>}, {transform_indices = @transform_11, window_bounds = array<i64: 1, 128, 32>}, {transform_indices = @transform_12, window_bounds = array<i64: 1, 1, 32>}, {transform_indices = @transform_13, window_bounds = array<i64: 1, 8, 32>}]} {
    %c0_i32 = arith.constant 0 : i32
    %0 = arith.cmpi eq, %arg1, %c0_i32 : i32
    %1 = arith.extui %0 : i1 to i32
    %c0_i32_0 = arith.constant 0 : i32
    %2 = arith.cmpi ne, %1, %c0_i32_0 : i32
    scf.if %2 {
      %c0_64 = arith.constant 0 : index
      %c0_65 = arith.constant 0 : index
      %c0_66 = arith.constant 0 : index
      %167 = vector.load %arg2[%c0_64, %c0_65, %c0_66] : memref<1x8x32xf32, #tpu.memory_space<vmem>>, vector<1x8x32xf32>
      %168 = vector.shape_cast %167 : vector<1x8x32xf32> to vector<8x32xf32>
      %c0_67 = arith.constant 0 : index
      %c0_68 = arith.constant 0 : index
      %c0_69 = arith.constant 0 : index
      %169 = vector.load %arg15[%c0_67, %c0_68, %c0_69] : memref<1x8x32xf32, #tpu.memory_space<vmem>>, vector<1x8x32xf32>
      %170 = vector.shape_cast %169 : vector<1x8x32xf32> to vector<8x32xf32>
      %171 = vector.shape_cast %168 : vector<8x32xf32> to vector<1x8x32xf32>
      tpu.vector_store %arg15[%c0_67, %c0_68, %c0_69], %171 {strides = array<i32>} : memref<1x8x32xf32, #tpu.memory_space<vmem>>, vector<1x8x32xf32>,
    } else {
    }
    %c0 = arith.constant 0 : index
    %c0_1 = arith.constant 0 : index
    %c0_2 = arith.constant 0 : index
    %3 = vector.load %arg15[%c0, %c0_1, %c0_2] : memref<1x8x32xf32, #tpu.memory_space<vmem>>, vector<1x8x32xf32>
    %4 = vector.shape_cast %3 : vector<1x8x32xf32> to vector<8x32xf32>
    %c0_3 = arith.constant 0 : index
    %c0_4 = arith.constant 0 : index
    %c0_5 = arith.constant 0 : index
    %5 = vector.load %arg3[%c0_3, %c0_4, %c0_5] : memref<1x1x32xf32, #tpu.memory_space<vmem>>, vector<1x1x32xf32>
    %6 = vector.shape_cast %5 : vector<1x1x32xf32> to vector<1x32xf32>
    %c0_6 = arith.constant 0 : index
    %c0_7 = arith.constant 0 : index
    %c0_8 = arith.constant 0 : index
    %7 = vector.load %arg4[%c0_6, %c0_7, %c0_8] : memref<1x1x32xf32, #tpu.memory_space<vmem>>, vector<1x1x32xf32>
    %8 = vector.shape_cast %7 : vector<1x1x32xf32> to vector<1x32xf32>
    %cst = arith.constant dense<0.000000e+00> : vector<8xf32>
    %9 = vector.multi_reduction <add>, %4, %cst [1] : vector<8x32xf32> to vector<8xf32>
    %10 = vector.shape_cast %9 : vector<8xf32> to vector<8x1xf32>
    %cst_9 = arith.constant 3.200000e+01 : f32
    %11 = vector.broadcast %cst_9 : f32 to vector<8x1xf32>
    %12 = arith.divf %10, %11 : vector<8x1xf32>
    %13 = vector.broadcast %12 : vector<8x1xf32> to vector<8x32xf32>
    %14 = arith.subf %4, %13 : vector<8x32xf32>
    %15 = arith.mulf %14, %14 : vector<8x32xf32>
    %cst_10 = arith.constant dense<0.000000e+00> : vector<8xf32>
    %16 = vector.multi_reduction <add>, %15, %cst_10 [1] : vector<8x32xf32> to vector<8xf32>
    %17 = vector.shape_cast %16 : vector<8xf32> to vector<8x1xf32>
    %cst_11 = arith.constant 3.200000e+01 : f32
    %18 = vector.broadcast %cst_11 : f32 to vector<8x1xf32>
    %19 = arith.divf %17, %18 : vector<8x1xf32>
    %20 = vector.broadcast %12 : vector<8x1xf32> to vector<8x32xf32>
    %21 = arith.subf %4, %20 : vector<8x32xf32>
    %cst_12 = arith.constant 9.99999974E-6 : f32
    %22 = vector.broadcast %cst_12 : f32 to vector<8x1xf32>
    %23 = arith.addf %19, %22 : vector<8x1xf32>
    %24 = math.rsqrt %23 : vector<8x1xf32>
    %25 = vector.broadcast %24 : vector<8x1xf32> to vector<8x32xf32>
    %26 = arith.mulf %21, %25 : vector<8x32xf32>
    %27 = vector.broadcast %6 : vector<1x32xf32> to vector<8x32xf32>
    %28 = arith.mulf %26, %27 : vector<8x32xf32>
    %29 = vector.broadcast %8 : vector<1x32xf32> to vector<8x32xf32>
    %30 = arith.addf %28, %29 : vector<8x32xf32>
    %31 = arith.truncf %30 : vector<8x32xf32> to vector<8x32xbf16>
    %c0_13 = arith.constant 0 : index
    %c0_14 = arith.constant 0 : index
    %c0_15 = arith.constant 0 : index
    %32 = vector.load %arg5[%c0_13, %c0_14, %c0_15] : memref<1x32x96xbf16, #tpu.memory_space<vmem>>, vector<1x32x96xbf16>
    %33 = vector.shape_cast %32 : vector<1x32x96xbf16> to vector<32x96xbf16>
    %cst_16 = arith.constant dense<0.000000e+00> : vector<8x96xf32>
    %34 = tpu.matmul %31, %33, %cst_16 {dimension_numbers = #tpu.dot_dimension_numbers<[1], [0], [0], [1], [0, 0, 1, 1], [], []>} : vector<8x32xbf16>, vector<32x96xbf16>, vector<8x96xf32> -> vector<8x96xf32>
    %c0_17 = arith.constant 0 : index
    %c0_18 = arith.constant 0 : index
    %c0_19 = arith.constant 0 : index
    %35 = vector.load %arg6[%c0_17, %c0_18, %c0_19] : memref<1x1x96xf32, #tpu.memory_space<vmem>>, vector<1x1x96xf32>
    %36 = vector.shape_cast %35 : vector<1x1x96xf32> to vector<1x96xf32>
    %37 = vector.broadcast %36 : vector<1x96xf32> to vector<8x96xf32>
    %38 = arith.addf %34, %37 : vector<8x96xf32>
    %39 = vector.extract_strided_slice %38 {offsets = [0, 0], sizes = [8, 32], strides = [1, 1]} : vector<8x96xf32> to vector<8x32xf32>
    %40 = vector.extract_strided_slice %39 {offsets = [0, 0], sizes = [8, 8], strides = [1, 1]} : vector<8x32xf32> to vector<8x8xf32>
    %41 = vector.extract_strided_slice %39 {offsets = [0, 8], sizes = [8, 8], strides = [1, 1]} : vector<8x32xf32> to vector<8x8xf32>
    %42 = vector.extract_strided_slice %39 {offsets = [0, 16], sizes = [8, 8], strides = [1, 1]} : vector<8x32xf32> to vector<8x8xf32>
    %43 = vector.extract_strided_slice %39 {offsets = [0, 24], sizes = [8, 8], strides = [1, 1]} : vector<8x32xf32> to vector<8x8xf32>
    %44 = vector.shape_cast %40 : vector<8x8xf32> to vector<1x8x8xf32>
    %45 = vector.shape_cast %41 : vector<8x8xf32> to vector<1x8x8xf32>
    %46 = vector.shape_cast %42 : vector<8x8xf32> to vector<1x8x8xf32>
    %47 = vector.shape_cast %43 : vector<8x8xf32> to vector<1x8x8xf32>
    %48 = tpu.concatenate %44, %45, %46, %47 in 0 : vector<1x8x8xf32>, vector<1x8x8xf32>, vector<1x8x8xf32>, vector<1x8x8xf32> -> vector<4x8x8xf32>
    %49 = arith.truncf %48 : vector<4x8x8xf32> to vector<4x8x8xbf16>
    %50 = vector.extract_strided_slice %38 {offsets = [0, 32], sizes = [8, 32], strides = [1, 1]} : vector<8x96xf32> to vector<8x32xf32>
    %51 = vector.extract_strided_slice %50 {offsets = [0, 0], sizes = [8, 8], strides = [1, 1]} : vector<8x32xf32> to vector<8x8xf32>
    %52 = vector.extract_strided_slice %50 {offsets = [0, 8], sizes = [8, 8], strides = [1, 1]} : vector<8x32xf32> to vector<8x8xf32>
    %53 = vector.extract_strided_slice %50 {offsets = [0, 16], sizes = [8, 8], strides = [1, 1]} : vector<8x32xf32> to vector<8x8xf32>
    %54 = vector.extract_strided_slice %50 {offsets = [0, 24], sizes = [8, 8], strides = [1, 1]} : vector<8x32xf32> to vector<8x8xf32>
    %55 = vector.shape_cast %51 : vector<8x8xf32> to vector<1x8x8xf32>
    %56 = vector.shape_cast %52 : vector<8x8xf32> to vector<1x8x8xf32>
    %57 = vector.shape_cast %53 : vector<8x8xf32> to vector<1x8x8xf32>
    %58 = vector.shape_cast %54 : vector<8x8xf32> to vector<1x8x8xf32>
    %59 = tpu.concatenate %55, %56, %57, %58 in 0 : vector<1x8x8xf32>, vector<1x8x8xf32>, vector<1x8x8xf32>, vector<1x8x8xf32> -> vector<4x8x8xf32>
    %60 = arith.truncf %59 : vector<4x8x8xf32> to vector<4x8x8xbf16>
    %61 = vector.extract_strided_slice %38 {offsets = [0, 64], sizes = [8, 32], strides = [1, 1]} : vector<8x96xf32> to vector<8x32xf32>
    %62 = vector.extract_strided_slice %61 {offsets = [0, 0], sizes = [8, 8], strides = [1, 1]} : vector<8x32xf32> to vector<8x8xf32>
    %63 = vector.extract_strided_slice %61 {offsets = [0, 8], sizes = [8, 8], strides = [1, 1]} : vector<8x32xf32> to vector<8x8xf32>
    %64 = vector.extract_strided_slice %61 {offsets = [0, 16], sizes = [8, 8], strides = [1, 1]} : vector<8x32xf32> to vector<8x8xf32>
    %65 = vector.extract_strided_slice %61 {offsets = [0, 24], sizes = [8, 8], strides = [1, 1]} : vector<8x32xf32> to vector<8x8xf32>
    %66 = vector.shape_cast %62 : vector<8x8xf32> to vector<1x8x8xf32>
    %67 = vector.shape_cast %63 : vector<8x8xf32> to vector<1x8x8xf32>
    %68 = vector.shape_cast %64 : vector<8x8xf32> to vector<1x8x8xf32>
    %69 = vector.shape_cast %65 : vector<8x8xf32> to vector<1x8x8xf32>
    %70 = tpu.concatenate %66, %67, %68, %69 in 0 : vector<1x8x8xf32>, vector<1x8x8xf32>, vector<1x8x8xf32>, vector<1x8x8xf32> -> vector<4x8x8xf32>
    %71 = arith.truncf %70 : vector<4x8x8xf32> to vector<4x8x8xbf16>
    "tpu.trace_start"() <{level = 10 : i32, message = "hqd,hkd->hqk"}> : () -> ()
    %cst_20 = arith.constant dense<0.000000e+00> : vector<4x8x8xf32>
    %72 = tpu.matmul %49, %60, %cst_20 {dimension_numbers = #tpu.dot_dimension_numbers<[2], [2], [1], [1], [0, 0, 0, 1, 1, 1], [0], [0]>} : vector<4x8x8xbf16>, vector<4x8x8xbf16>, vector<4x8x8xf32> -> vector<4x8x8xf32>
    "tpu.trace_stop"() : () -> ()
    %cst_21 = arith.constant 0.353553385 : f32
    %73 = vector.broadcast %cst_21 : f32 to vector<4x8x8xf32>
    %74 = arith.mulf %72, %73 : vector<4x8x8xf32>
    %75 = tpu.iota {dimensions = array<i32: 0>} : vector<8x8xi32>
    %76 = tpu.iota {dimensions = array<i32: 1>} : vector<8x8xi32>
    %77 = arith.cmpi sle, %76, %75 : vector<8x8xi32>
    %78 = vector.shape_cast %77 : vector<8x8xi1> to vector<1x8x8xi1>
    %cst_22 = arith.constant -1.000000e+30 : f32
    %79 = vector.shape_cast %78 : vector<1x8x8xi1> to vector<1x8x8xi1>
    %80 = vector.broadcast %79 : vector<1x8x8xi1> to vector<4x8x8xi1>
    %81 = vector.broadcast %cst_22 : f32 to vector<4x8x8xf32>
    %82 = arith.select %80, %74, %81 : vector<4x8x8xi1>, vector<4x8x8xf32>
    %cst_23 = arith.constant dense<0xFF800000> : vector<4x8xf32>
    %83 = vector.multi_reduction <maximumf>, %82, %cst_23 [2] : vector<4x8x8xf32> to vector<4x8xf32>
    %84 = vector.shape_cast %83 : vector<4x8xf32> to vector<4x8x1xf32>
    %85 = vector.broadcast %84 : vector<4x8x1xf32> to vector<4x8x8xf32>
    %86 = arith.subf %82, %85 : vector<4x8x8xf32>
    %87 = math.exp %86 : vector<4x8x8xf32>
    %cst_24 = arith.constant dense<0.000000e+00> : vector<4x8xf32>
    %88 = vector.multi_reduction <add>, %87, %cst_24 [2] : vector<4x8x8xf32> to vector<4x8xf32>
    %89 = vector.shape_cast %88 : vector<4x8xf32> to vector<4x8x1xf32>
    %90 = tpu.reciprocal %89 {approx = true} : vector<4x8x1xf32> -> vector<4x8x1xf32>
    %91 = vector.broadcast %90 : vector<4x8x1xf32> to vector<4x8x8xf32>
    %92 = arith.mulf %87, %91 : vector<4x8x8xf32>
    %93 = arith.truncf %92 : vector<4x8x8xf32> to vector<4x8x8xbf16>
    "tpu.trace_start"() <{level = 10 : i32, message = "hqk,hkd->hqd"}> : () -> ()
    %cst_25 = arith.constant dense<0.000000e+00> : vector<4x8x8xf32>
    %94 = tpu.matmul %93, %71, %cst_25 {dimension_numbers = #tpu.dot_dimension_numbers<[2], [1], [1], [2], [0, 0, 0, 1, 1, 2], [0], [0]>} : vector<4x8x8xbf16>, vector<4x8x8xbf16>, vector<4x8x8xf32> -> vector<4x8x8xf32>
    "tpu.trace_stop"() : () -> ()
    %95 = vector.extract_strided_slice %94 {offsets = [0, 0, 0], sizes = [1, 8, 8], strides = [1, 1, 1]} : vector<4x8x8xf32> to vector<1x8x8xf32>
    %96 = vector.shape_cast %95 : vector<1x8x8xf32> to vector<8x8xf32>
    %97 = vector.extract_strided_slice %94 {offsets = [1, 0, 0], sizes = [1, 8, 8], strides = [1, 1, 1]} : vector<4x8x8xf32> to vector<1x8x8xf32>
    %98 = vector.shape_cast %97 : vector<1x8x8xf32> to vector<8x8xf32>
    %99 = vector.extract_strided_slice %94 {offsets = [2, 0, 0], sizes = [1, 8, 8], strides = [1, 1, 1]} : vector<4x8x8xf32> to vector<1x8x8xf32>
    %100 = vector.shape_cast %99 : vector<1x8x8xf32> to vector<8x8xf32>
    %101 = vector.extract_strided_slice %94 {offsets = [3, 0, 0], sizes = [1, 8, 8], strides = [1, 1, 1]} : vector<4x8x8xf32> to vector<1x8x8xf32>
    %102 = vector.shape_cast %101 : vector<1x8x8xf32> to vector<8x8xf32>
    %103 = tpu.concatenate %96, %98, %100, %102 in 1 : vector<8x8xf32>, vector<8x8xf32>, vector<8x8xf32>, vector<8x8xf32> -> vector<8x32xf32>
    %104 = arith.truncf %103 : vector<8x32xf32> to vector<8x32xbf16>
    %c0_26 = arith.constant 0 : index
    %c0_27 = arith.constant 0 : index
    %c0_28 = arith.constant 0 : index
    %105 = vector.load %arg7[%c0_26, %c0_27, %c0_28] : memref<1x32x32xbf16, #tpu.memory_space<vmem>>, vector<1x32x32xbf16>
    %106 = vector.shape_cast %105 : vector<1x32x32xbf16> to vector<32x32xbf16>
    %cst_29 = arith.constant dense<0.000000e+00> : vector<8x32xf32>
    %107 = tpu.matmul %104, %106, %cst_29 {dimension_numbers = #tpu.dot_dimension_numbers<[1], [0], [0], [1], [0, 0, 1, 1], [], []>} : vector<8x32xbf16>, vector<32x32xbf16>, vector<8x32xf32> -> vector<8x32xf32>
    %c0_30 = arith.constant 0 : index
    %c0_31 = arith.constant 0 : index
    %c0_32 = arith.constant 0 : index
    %108 = vector.load %arg8[%c0_30, %c0_31, %c0_32] : memref<1x1x32xf32, #tpu.memory_space<vmem>>, vector<1x1x32xf32>
    %109 = vector.shape_cast %108 : vector<1x1x32xf32> to vector<1x32xf32>
    %110 = vector.broadcast %109 : vector<1x32xf32> to vector<8x32xf32>
    %111 = arith.addf %107, %110 : vector<8x32xf32>
    %112 = arith.addf %4, %111 : vector<8x32xf32>
    %c0_33 = arith.constant 0 : index
    %c0_34 = arith.constant 0 : index
    %c0_35 = arith.constant 0 : index
    %113 = vector.load %arg9[%c0_33, %c0_34, %c0_35] : memref<1x1x32xf32, #tpu.memory_space<vmem>>, vector<1x1x32xf32>
    %114 = vector.shape_cast %113 : vector<1x1x32xf32> to vector<1x32xf32>
    %c0_36 = arith.constant 0 : index
    %c0_37 = arith.constant 0 : index
    %c0_38 = arith.constant 0 : index
    %115 = vector.load %arg10[%c0_36, %c0_37, %c0_38] : memref<1x1x32xf32, #tpu.memory_space<vmem>>, vector<1x1x32xf32>
    %116 = vector.shape_cast %115 : vector<1x1x32xf32> to vector<1x32xf32>
    %cst_39 = arith.constant dense<0.000000e+00> : vector<8xf32>
    %117 = vector.multi_reduction <add>, %112, %cst_39 [1] : vector<8x32xf32> to vector<8xf32>
    %118 = vector.shape_cast %117 : vector<8xf32> to vector<8x1xf32>
    %cst_40 = arith.constant 3.200000e+01 : f32
    %119 = vector.broadcast %cst_40 : f32 to vector<8x1xf32>
    %120 = arith.divf %118, %119 : vector<8x1xf32>
    %121 = vector.broadcast %120 : vector<8x1xf32> to vector<8x32xf32>
    %122 = arith.subf %112, %121 : vector<8x32xf32>
    %123 = arith.mulf %122, %122 : vector<8x32xf32>
    %cst_41 = arith.constant dense<0.000000e+00> : vector<8xf32>
    %124 = vector.multi_reduction <add>, %123, %cst_41 [1] : vector<8x32xf32> to vector<8xf32>
    %125 = vector.shape_cast %124 : vector<8xf32> to vector<8x1xf32>
    %cst_42 = arith.constant 3.200000e+01 : f32
    %126 = vector.broadcast %cst_42 : f32 to vector<8x1xf32>
    %127 = arith.divf %125, %126 : vector<8x1xf32>
    %128 = vector.broadcast %120 : vector<8x1xf32> to vector<8x32xf32>
    %129 = arith.subf %112, %128 : vector<8x32xf32>
    %cst_43 = arith.constant 9.99999974E-6 : f32
    %130 = vector.broadcast %cst_43 : f32 to vector<8x1xf32>
    %131 = arith.addf %127, %130 : vector<8x1xf32>
    %132 = math.rsqrt %131 : vector<8x1xf32>
    %133 = vector.broadcast %132 : vector<8x1xf32> to vector<8x32xf32>
    %134 = arith.mulf %129, %133 : vector<8x32xf32>
    %135 = vector.broadcast %114 : vector<1x32xf32> to vector<8x32xf32>
    %136 = arith.mulf %134, %135 : vector<8x32xf32>
    %137 = vector.broadcast %116 : vector<1x32xf32> to vector<8x32xf32>
    %138 = arith.addf %136, %137 : vector<8x32xf32>
    %139 = arith.truncf %138 : vector<8x32xf32> to vector<8x32xbf16>
    %c0_44 = arith.constant 0 : index
    %c0_45 = arith.constant 0 : index
    %c0_46 = arith.constant 0 : index
    %140 = vector.load %arg11[%c0_44, %c0_45, %c0_46] : memref<1x32x128xbf16, #tpu.memory_space<vmem>>, vector<1x32x128xbf16>
    %141 = vector.shape_cast %140 : vector<1x32x128xbf16> to vector<32x128xbf16>
    %cst_47 = arith.constant dense<0.000000e+00> : vector<8x128xf32>
    %142 = tpu.matmul %139, %141, %cst_47 {dimension_numbers = #tpu.dot_dimension_numbers<[1], [0], [0], [1], [0, 0, 1, 1], [], []>} : vector<8x32xbf16>, vector<32x128xbf16>, vector<8x128xf32> -> vector<8x128xf32>
    %c0_48 = arith.constant 0 : index
    %c0_49 = arith.constant 0 : index
    %c0_50 = arith.constant 0 : index
    %143 = vector.load %arg12[%c0_48, %c0_49, %c0_50] : memref<1x1x128xf32, #tpu.memory_space<vmem>>, vector<1x1x128xf32>
    %144 = vector.shape_cast %143 : vector<1x1x128xf32> to vector<1x128xf32>
    %145 = vector.broadcast %144 : vector<1x128xf32> to vector<8x128xf32>
    %146 = arith.addf %142, %145 : vector<8x128xf32>
    %cst_51 = arith.constant 5.000000e-01 : f32
    %147 = vector.broadcast %cst_51 : f32 to vector<8x128xf32>
    %148 = arith.mulf %147, %146 : vector<8x128xf32>
    %cst_52 = arith.constant 0.707106769 : f32
    %149 = vector.broadcast %cst_52 : f32 to vector<8x128xf32>
    %150 = arith.mulf %146, %149 : vector<8x128xf32>
    %151 = math.erf %150 : vector<8x128xf32>
    %cst_53 = arith.constant 1.000000e+00 : f32
    %152 = vector.broadcast %cst_53 : f32 to vector<8x128xf32>
    %153 = arith.addf %152, %151 : vector<8x128xf32>
    %154 = arith.mulf %148, %153 : vector<8x128xf32>
    %155 = arith.truncf %154 : vector<8x128xf32> to vector<8x128xbf16>
    %c0_54 = arith.constant 0 : index
    %c0_55 = arith.constant 0 : index
    %c0_56 = arith.constant 0 : index
    %156 = vector.load %arg13[%c0_54, %c0_55, %c0_56] : memref<1x128x32xbf16, #tpu.memory_space<vmem>>, vector<1x128x32xbf16>
    %157 = vector.shape_cast %156 : vector<1x128x32xbf16> to vector<128x32xbf16>
    %cst_57 = arith.constant dense<0.000000e+00> : vector<8x32xf32>
    %158 = tpu.matmul %155, %157, %cst_57 {dimension_numbers = #tpu.dot_dimension_numbers<[1], [0], [0], [1], [0, 0, 1, 1], [], []>} : vector<8x128xbf16>, vector<128x32xbf16>, vector<8x32xf32> -> vector<8x32xf32>
    %c0_58 = arith.constant 0 : index
    %c0_59 = arith.constant 0 : index
    %c0_60 = arith.constant 0 : index
    %159 = vector.load %arg14[%c0_58, %c0_59, %c0_60] : memref<1x1x32xf32, #tpu.memory_space<vmem>>, vector<1x1x32xf32>
    %160 = vector.shape_cast %159 : vector<1x1x32xf32> to vector<1x32xf32>
    %161 = vector.broadcast %160 : vector<1x32xf32> to vector<8x32xf32>
    %162 = arith.addf %158, %161 : vector<8x32xf32>
    %163 = arith.addf %112, %162 : vector<8x32xf32>
    %c0_61 = arith.constant 0 : index
    %c0_62 = arith.constant 0 : index
    %c0_63 = arith.constant 0 : index
    %164 = vector.load %arg15[%c0_61, %c0_62, %c0_63] : memref<1x8x32xf32, #tpu.memory_space<vmem>>, vector<1x8x32xf32>
    %165 = vector.shape_cast %164 : vector<1x8x32xf32> to vector<8x32xf32>
    %166 = vector.shape_cast %163 : vector<8x32xf32> to vector<1x8x32xf32>
    tpu.vector_store %arg15[%c0_61, %c0_62, %c0_63], %166 {strides = array<i32>} : memref<1x8x32xf32, #tpu.memory_space<vmem>>, vector<1x8x32xf32>,
    return
  }
  func.func @transform_0(%arg0: i32, %arg1: i32) -> (i32, i32, i32) {
    %c0_i32 = arith.constant 0 : i32
    %c0_i32_0 = arith.constant 0 : i32
    %c0_i32_1 = arith.constant 0 : i32
    return %arg0, %c0_i32, %c0_i32_0 : i32, i32, i32
  }
  func.func @transform_1(%arg0: i32, %arg1: i32) -> (i32, i32, i32) {
    %c0_i32 = arith.constant 0 : i32
    %c0_i32_0 = arith.constant 0 : i32
    %c0_i32_1 = arith.constant 0 : i32
    return %arg1, %c0_i32, %c0_i32_0 : i32, i32, i32
  }
  func.func @transform_2(%arg0: i32, %arg1: i32) -> (i32, i32, i32) {
    %c0_i32 = arith.constant 0 : i32
    %c0_i32_0 = arith.constant 0 : i32
    %c0_i32_1 = arith.constant 0 : i32
    return %arg1, %c0_i32, %c0_i32_0 : i32, i32, i32
  }
  func.func @transform_3(%arg0: i32, %arg1: i32) -> (i32, i32, i32) {
    %c0_i32 = arith.constant 0 : i32
    %c0_i32_0 = arith.constant 0 : i32
    %c0_i32_1 = arith.constant 0 : i32
    return %arg1, %c0_i32, %c0_i32_0 : i32, i32, i32
  }
  func.func @transform_4(%arg0: i32, %arg1: i32) -> (i32, i32, i32) {
    %c0_i32 = arith.constant 0 : i32
    %c0_i32_0 = arith.constant 0 : i32
    %c0_i32_1 = arith.constant 0 : i32
    return %arg1, %c0_i32, %c0_i32_0 : i32, i32, i32
  }
  func.func @transform_5(%arg0: i32, %arg1: i32) -> (i32, i32, i32) {
    %c0_i32 = arith.constant 0 : i32
    %c0_i32_0 = arith.constant 0 : i32
    %c0_i32_1 = arith.constant 0 : i32
    return %arg1, %c0_i32, %c0_i32_0 : i32, i32, i32
  }
  func.func @transform_6(%arg0: i32, %arg1: i32) -> (i32, i32, i32) {
    %c0_i32 = arith.constant 0 : i32
    %c0_i32_0 = arith.constant 0 : i32
    %c0_i32_1 = arith.constant 0 : i32
    return %arg1, %c0_i32, %c0_i32_0 : i32, i32, i32
  }
  func.func @transform_7(%arg0: i32, %arg1: i32) -> (i32, i32, i32) {
    %c0_i32 = arith.constant 0 : i32
    %c0_i32_0 = arith.constant 0 : i32
    %c0_i32_1 = arith.constant 0 : i32
    return %arg1, %c0_i32, %c0_i32_0 : i32, i32, i32
  }
  func.func @transform_8(%arg0: i32, %arg1: i32) -> (i32, i32, i32) {
    %c0_i32 = arith.constant 0 : i32
    %c0_i32_0 = arith.constant 0 : i32
    %c0_i32_1 = arith.constant 0 : i32
    return %arg1, %c0_i32, %c0_i32_0 : i32, i32, i32
  }
  func.func @transform_9(%arg0: i32, %arg1: i32) -> (i32, i32, i32) {
    %c0_i32 = arith.constant 0 : i32
    %c0_i32_0 = arith.constant 0 : i32
    %c0_i32_1 = arith.constant 0 : i32
    return %arg1, %c0_i32, %c0_i32_0 : i32, i32, i32
  }
  func.func @transform_10(%arg0: i32, %arg1: i32) -> (i32, i32, i32) {
    %c0_i32 = arith.constant 0 : i32
    %c0_i32_0 = arith.constant 0 : i32
    %c0_i32_1 = arith.constant 0 : i32
    return %arg1, %c0_i32, %c0_i32_0 : i32, i32, i32
  }
  func.func @transform_11(%arg0: i32, %arg1: i32) -> (i32, i32, i32) {
    %c0_i32 = arith.constant 0 : i32
    %c0_i32_0 = arith.constant 0 : i32
    %c0_i32_1 = arith.constant 0 : i32
    return %arg1, %c0_i32, %c0_i32_0 : i32, i32, i32
  }
  func.func @transform_12(%arg0: i32, %arg1: i32) -> (i32, i32, i32) {
    %c0_i32 = arith.constant 0 : i32
    %c0_i32_0 = arith.constant 0 : i32
    %c0_i32_1 = arith.constant 0 : i32
    return %arg1, %c0_i32, %c0_i32_0 : i32, i32, i32
  }
  func.func @transform_13(%arg0: i32, %arg1: i32) -> (i32, i32, i32) {
    %c0_i32 = arith.constant 0 : i32
    %c0_i32_0 = arith.constant 0 : i32
    %c0_i32_1 = arith.constant 0 : i32
    return %arg0, %c0_i32, %c0_i32_0 : i32, i32, i32
  }
}

module attributes {stable_mosaic.version = 11 : i64} {
  func.func @_head_kernel(%arg0: i32, %arg1: memref<2x32xf32, #tpu.memory_space<vmem>>, %arg2: memref<1x32xf32, #tpu.memory_space<vmem>>, %arg3: memref<1x32xf32, #tpu.memory_space<vmem>>, %arg4: memref<32x128xbf16, #tpu.memory_space<vmem>>, %arg5: memref<2x128xf32, #tpu.memory_space<vmem>>) attributes {dimension_semantics = [#tpu.dimension_semantics<parallel>], iteration_bounds = array<i64: 1>, scalar_prefetch = 0 : i64, scratch_operands = 0 : i64, tpu.core_type = #tpu.core_type<tc>, window_params = [{pipeline_mode = #tpu.pipeline_mode<synchronous>, transform_indices = @transform_0, window_bounds = array<i64: 2, 32>}, {pipeline_mode = #tpu.pipeline_mode<synchronous>, transform_indices = @transform_1, window_bounds = array<i64: 1, 32>}, {pipeline_mode = #tpu.pipeline_mode<synchronous>, transform_indices = @transform_2, window_bounds = array<i64: 1, 32>}, {transform_indices = @transform_3, window_bounds = array<i64: 32, 128>}, {transform_indices = @transform_4, window_bounds = array<i64: 2, 128>}]} {
    %c0 = arith.constant 0 : index
    %c0_0 = arith.constant 0 : index
    %0 = vector.load %arg1[%c0, %c0_0] : memref<2x32xf32, #tpu.memory_space<vmem>>, vector<2x32xf32>
    %c0_1 = arith.constant 0 : index
    %c0_2 = arith.constant 0 : index
    %1 = vector.load %arg2[%c0_1, %c0_2] : memref<1x32xf32, #tpu.memory_space<vmem>>, vector<1x32xf32>
    %c0_3 = arith.constant 0 : index
    %c0_4 = arith.constant 0 : index
    %2 = vector.load %arg3[%c0_3, %c0_4] : memref<1x32xf32, #tpu.memory_space<vmem>>, vector<1x32xf32>
    %cst = arith.constant dense<0.000000e+00> : vector<2xf32>
    %3 = vector.multi_reduction <add>, %0, %cst [1] : vector<2x32xf32> to vector<2xf32>
    %4 = vector.shape_cast %3 : vector<2xf32> to vector<2x1xf32>
    %cst_5 = arith.constant 3.200000e+01 : f32
    %5 = vector.broadcast %cst_5 : f32 to vector<2x1xf32>
    %6 = arith.divf %4, %5 : vector<2x1xf32>
    %7 = vector.broadcast %6 : vector<2x1xf32> to vector<2x32xf32>
    %8 = arith.subf %0, %7 : vector<2x32xf32>
    %9 = arith.mulf %8, %8 : vector<2x32xf32>
    %cst_6 = arith.constant dense<0.000000e+00> : vector<2xf32>
    %10 = vector.multi_reduction <add>, %9, %cst_6 [1] : vector<2x32xf32> to vector<2xf32>
    %11 = vector.shape_cast %10 : vector<2xf32> to vector<2x1xf32>
    %cst_7 = arith.constant 3.200000e+01 : f32
    %12 = vector.broadcast %cst_7 : f32 to vector<2x1xf32>
    %13 = arith.divf %11, %12 : vector<2x1xf32>
    %14 = vector.broadcast %6 : vector<2x1xf32> to vector<2x32xf32>
    %15 = arith.subf %0, %14 : vector<2x32xf32>
    %cst_8 = arith.constant 9.99999974E-6 : f32
    %16 = vector.broadcast %cst_8 : f32 to vector<2x1xf32>
    %17 = arith.addf %13, %16 : vector<2x1xf32>
    %18 = math.rsqrt %17 : vector<2x1xf32>
    %19 = vector.broadcast %18 : vector<2x1xf32> to vector<2x32xf32>
    %20 = arith.mulf %15, %19 : vector<2x32xf32>
    %21 = vector.broadcast %1 : vector<1x32xf32> to vector<2x32xf32>
    %22 = arith.mulf %20, %21 : vector<2x32xf32>
    %23 = vector.broadcast %2 : vector<1x32xf32> to vector<2x32xf32>
    %24 = arith.addf %22, %23 : vector<2x32xf32>
    %25 = arith.truncf %24 : vector<2x32xf32> to vector<2x32xbf16>
    %c0_9 = arith.constant 0 : index
    %c0_10 = arith.constant 0 : index
    %26 = vector.load %arg4[%c0_9, %c0_10] : memref<32x128xbf16, #tpu.memory_space<vmem>>, vector<32x128xbf16>
    %cst_11 = arith.constant dense<0.000000e+00> : vector<2x128xf32>
    %27 = tpu.matmul %25, %26, %cst_11 {dimension_numbers = #tpu.dot_dimension_numbers<[1], [0], [0], [1], [0, 0, 1, 1], [], []>} : vector<2x32xbf16>, vector<32x128xbf16>, vector<2x128xf32> -> vector<2x128xf32>
    %c0_12 = arith.constant 0 : index
    %c0_13 = arith.constant 0 : index
    %28 = vector.load %arg5[%c0_12, %c0_13] : memref<2x128xf32, #tpu.memory_space<vmem>>, vector<2x128xf32>
    tpu.vector_store %arg5[%c0_12, %c0_13], %27 {strides = array<i32>} : memref<2x128xf32, #tpu.memory_space<vmem>>, vector<2x128xf32>,
    return
  }
  func.func @transform_0(%arg0: i32) -> (i32, i32) {
    %c0_i32 = arith.constant 0 : i32
    %c0_i32_0 = arith.constant 0 : i32
    %c0_i32_1 = arith.constant 0 : i32
    return %c0_i32, %c0_i32_0 : i32, i32
  }
  func.func @transform_1(%arg0: i32) -> (i32, i32) {
    %c0_i32 = arith.constant 0 : i32
    %c0_i32_0 = arith.constant 0 : i32
    %c0_i32_1 = arith.constant 0 : i32
    return %c0_i32, %c0_i32_0 : i32, i32
  }
  func.func @transform_2(%arg0: i32) -> (i32, i32) {
    %c0_i32 = arith.constant 0 : i32
    %c0_i32_0 = arith.constant 0 : i32
    %c0_i32_1 = arith.constant 0 : i32
    return %c0_i32, %c0_i32_0 : i32, i32
  }
  func.func @transform_3(%arg0: i32) -> (i32, i32) {
    %c0_i32 = arith.constant 0 : i32
    %c0_i32_0 = arith.constant 0 : i32
    return %c0_i32, %arg0 : i32, i32
  }
  func.func @transform_4(%arg0: i32) -> (i32, i32) {
    %c0_i32 = arith.constant 0 : i32
    %c0_i32_0 = arith.constant 0 : i32
    return %c0_i32, %arg0 : i32, i32
  }
}

</mosaic_0001>

<llo_original>
// kernel: transformer_forward.3
$region0: #{transformer_forward.3}
  #allocation0 [shape = 'u32[]', space=smem, size = 0x4, offset = 0x4, fixed_abs, tag = 'smem constant byte address 0x4 - core index']
  #allocation1 [shape = 'u32[72,128]{1,0:T(1,128)}', space=vmem, size = 0x9000, scoped, tag = 'internal scratch']
  %s0 = inlined_call_operand.vmem [shape: f32[2,32], index: 0, kind: input, shape index: {}]
  %s1 = inlined_call_operand.vmem [shape: f32[1,32], index: 1, kind: input, shape index: {}]
  %s2 = inlined_call_operand.vmem [shape: f32[1,32], index: 2, kind: input, shape index: {}]
  %s3 = inlined_call_operand.vmem [shape: bf16[32,128], index: 3, kind: input, shape index: {}]
  %s4 = inlined_call_operand.hbm [shape: f32[2,128], index: 4, kind: output, shape index: {}]
  %s5 = sld [smem:[#allocation0]]
  $region26: #{transformer_forward.3} parent=0
    _
  %s7 = ssub.s32 1, %s5
  %s8 = scalar_select 0, %s7, %s5
  $region1: #{transformer_forward.3} parent=0
    #allocation2 [shape = 'u8[1024]{0}', space=vmem, size = 0x400, scoped, tag = 'output window, operand 0, single buffered']
    #allocation3 [shape = 's32[1]{0}', space=sflag, size = 0x4, scoped, tag = 'scoped memory for transformer_forward.3']
    %9 = vsyncpa [#allocation3], 0
    // Predicated region
    $region2: #{transformer_forward.3} parent=1 // pred_check
      _
    $region3: #{transformer_forward.3} parent=1 // pred_check_branch
      %11 = sbr.rel (0) target = $region5
    $region4: #{transformer_forward.3} parent=1 // pred_region
      _
    $region5: #{transformer_forward.3} parent=1 // pred_fallthru
      _
    // Predicated region
    $region6: #{transformer_forward.3} parent=1 // pred_check
      _
    $region7: #{transformer_forward.3} parent=1 // pred_check_branch
      %13 = sbr.rel (0) target = $region9
    $region8: #{transformer_forward.3} parent=1 // pred_region
      _
    $region9: #{transformer_forward.3} parent=1 // pred_fallthru
      _
    // Predicated region
    $region10: #{transformer_forward.3} parent=1 // pred_check
      _
    $region11: #{transformer_forward.3} parent=1 // pred_check_branch
      %15 = sbr.rel (0) target = $region13
    $region12: #{transformer_forward.3} parent=1 // pred_region
      _
    $region13: #{transformer_forward.3} parent=1 // pred_fallthru
      _
    // Predicated region
    $region14: #{transformer_forward.3} parent=1 // pred_check
      _
    $region15: #{transformer_forward.3} parent=1 // pred_check_branch
      %17 = sbr.rel (0) target = $region17
    $region16: #{transformer_forward.3} parent=1 // pred_region
      _
    $region17: #{transformer_forward.3} parent=1 // pred_fallthru
      _
    %v19 = vld [vmem:[%s0] sm:$0x3]
    %v20 = vld [vmem:[%s1] sm:$0x1]
    %v21 = vld [vmem:[%s2] sm:$0x1]
    %vm22 = vcmask 254976
    %v23 = vsel %vm22, %v19, 0.0
    %24 = vadd.xlane.f32.xlu0 %v23
    %v25 = vpop.xlane.xlu0 %24
    %v26 = vrcp.pop 32.0
    %v27 = vmul.f32 32.0, %v26
    %v28 = vsub.f32 1.0, %v27
    %v29 = vmul.f32 %v26, %v28
    %v30 = vadd.f32 %v26, %v29
    %vm31 = vweird.f32 %v26
    %v32 = vsel %vm31, %v26, %v30
    %v33 = vmul.f32 %v25, %v32
    %v34 = vsub.f32 %v19, %v33
    %v35 = vmul.f32 %v34, %v34
    %v36 = vsel %vm22, %v35, 0.0
    %37 = vadd.xlane.f32.xlu0 %v36
    %v38 = vpop.xlane.xlu0 %37
    %v39 = vmul.f32 %v38, %v32
    %v40 = vadd.f32 %v39, 1e-05
    %v41 = vrsqrt.pop %v40
    %v42 = vmul.f32 %v41, %v40
    %v43 = vmul.f32 %v42, %v41
    %v44 = vmul.f32 0.5, %v43
    %v45 = vsub.f32 1.5, %v44
    %v46 = vmul.f32 %v41, %v45
    %vm47 = vweird.f32 %v40
    %vm48 = vweird.f32 %v41
    %vm49 = vmor %vm47, %vm48
    %v50 = vsel %vm49, %v41, %v46
    %v51 = vmul.f32 %v34, %v50
    %v53 = vperm.slane %v20, 0
    %v55 = vmul.f32 %v51, %v53
    %v57 = vperm.slane %v21, 0
    %v59 = vadd.f32 %v55, %v57
    %v60 = vpack.c.bf16 %v59, %v59
    %v61 = vld [vmem:[%s3] sm:$0xf]
    %v62 = vld [vmem:[%s3 + $0x4] sm:$0xf]
    %v63 = vld [vmem:[%s3 + $0x8] sm:$0xf]
    %v64 = vld [vmem:[%s3 + $0xc] sm:$0xf]
    %v69 = vunpack.c.l.b16 %v61
    %v70 = vunpack.c.l.b16 %v62
    %v71 = vunpack.c.l.b16 %v63
    %v72 = vunpack.c.l.b16 %v64
    %v73 = vpack.c.b16 %v70, %v69
    %v74 = vpack.c.b16 %v72, %v71
    %vm77 = vcmask 261120
    %v79 = vsel %vm77, %v60, 0
    %81 = vmatpush.bf16.msra.mxu0 0
    %82 = vmatpush.bf16.msra.mxu0 0
    %83 = vmatpush.bf16.msra.mxu0 0
    %84 = vmatpush.bf16.msra.mxu0 0
    %85 = vmatpush.bf16.msra.mxu0 0
    %86 = vmatpush.bf16.msra.mxu0 0
    %87 = vmatpush.bf16.msra.mxu0 %v74
    %88 = vmatpush.bf16.msra.mxu0 %v73
    %89 = vmatmul.bf16.gmra.mxu0 %v79
    %v90 = vpop.f32.mrf.mxu0
    %v91 = vadd.f32 0.0, %v90
    %v92 = vpop.f32.mrf.mxu0
    %93 = vdwg.mxu0
    %94 = vst [vmem:[#allocation2] sm:$0x3] %v91
    // Predicated region
    $region18: #{transformer_forward.3} parent=1 // pred_check
      _
    $region19: #{transformer_forward.3} parent=1 // pred_check_branch
      %96 = sbr.rel (0) target = $region21
    $region20: #{transformer_forward.3} parent=1 // pred_region
      %98 = vsyncadd [#allocation3], 0
      %s100 = sshll.u32 [#allocation2], 4
      %s101 = int_to_ptr.vmem [resolvable:$true] %s100
      %s102 = sshll.u32 %s4, 4
      %s103 = int_to_ptr.hbm [resolvable:$true] %s102
      %105 = dma.vmem_to_hbm [thread:$0]  %s101, 32, %s103, [#allocation3]
    $region21: #{transformer_forward.3} parent=1 // pred_fallthru
      _
    // Predicated region
    $region22: #{transformer_forward.3} parent=1 // pred_check
      _
    $region23: #{transformer_forward.3} parent=1 // pred_check_branch
      %107 = sbr.rel (0) target = $region25
    $region24: #{transformer_forward.3} parent=1 // pred_region
      %109 = dma.done [#allocation3], 32
    $region25: #{transformer_forward.3} parent=1 // pred_fallthru
      _
    %110 = vsyncpa [#allocation3], 1

// kernel: transformer_forward.2
$region0: #{transformer_forward.2}
  #allocation0 [shape = 'u32[]', space=smem, size = 0x4, offset = 0x4, fixed_abs, tag = 'smem constant byte address 0x4 - core index']
  #allocation1 [shape = 'u32[72,128]{1,0:T(1,128)}', space=vmem, size = 0x9000, scoped, tag = 'internal scratch']
  %s0 = inlined_call_operand.vmem [shape: f32[2,8,32], index: 0, kind: input, shape index: {}]
  %s1 = inlined_call_operand.vmem [shape: f32[2,1,32], index: 1, kind: input, shape index: {}]
  %s2 = inlined_call_operand.vmem [shape: f32[2,1,32], index: 2, kind: input, shape index: {}]
  %s3 = inlined_call_operand.vmem [shape: bf16[2,32,96], index: 3, kind: input, shape index: {}]
  %s4 = inlined_call_operand.vmem [shape: f32[2,1,96], index: 4, kind: input, shape index: {}]
  %s5 = inlined_call_operand.vmem [shape: bf16[2,32,32], index: 5, kind: input, shape index: {}]
  %s6 = inlined_call_operand.vmem [shape: f32[2,1,32], index: 6, kind: input, shape index: {}]
  %s7 = inlined_call_operand.vmem [shape: f32[2,1,32], index: 7, kind: input, shape index: {}]
  %s8 = inlined_call_operand.vmem [shape: f32[2,1,32], index: 8, kind: input, shape index: {}]
  %s9 = inlined_call_operand.vmem [shape: bf16[2,32,128], index: 9, kind: input, shape index: {}]
  %s10 = inlined_call_operand.vmem [shape: f32[2,1,128], index: 10, kind: input, shape index: {}]
  %s11 = inlined_call_operand.vmem [shape: bf16[2,128,32], index: 11, kind: input, shape index: {}]
  %s12 = inlined_call_operand.vmem [shape: f32[2,1,32], index: 12, kind: input, shape index: {}]
  %s13 = inlined_call_operand.vmem [shape: f32[2,8,32], index: 13, kind: output, shape index: {}]
  %s14 = sld [smem:[#allocation0]]
  $region89: #{transformer_forward.2} parent=0
    _
  %s16 = ssub.s32 1, %s14
  %s17 = scalar_select 0, %s16, %s14
  loop: start=0, step=1, limit=6
  $region2: #{transformer_forward.2} parent=0 // loop_pre_header
    _
  $region3: #{transformer_forward.2} parent=0 // loop_header
    %s19 = sphi 0, %s23
    %p20 = scmp.ge.s32.totalorder %s19, 6
    %s26 = sphi 0, %s38
    %s27 = sphi 0, %s34
    %s28 = sphi 0, %s26
    %s29 = sphi 0, %s27
    %s30 = sphi 0, %s28
    %s31 = sphi 0, %s29
    %s41 = sphi 0, %s43
    %s44 = sphi 0, %s41
    %s45 = sphi 0, %s44
    %s61 = sphi 0, %s45
    %s67 = sphi 0, %s69
    %s70 = sphi 0, %s67
    %s71 = sphi 0, %s70
    %s87 = sphi 0, %s71
    %s93 = sphi 0, %s95
    %s96 = sphi 0, %s93
    %s97 = sphi 0, %s96
    %s113 = sphi 0, %s97
    %s119 = sphi 0, %s121
    %s122 = sphi 0, %s119
    %s123 = sphi 0, %s122
    %s139 = sphi 0, %s123
    %s145 = sphi 0, %s147
    %s148 = sphi 0, %s145
    %s149 = sphi 0, %s148
    %s165 = sphi 0, %s149
    %s171 = sphi 0, %s173
    %s174 = sphi 0, %s171
    %s175 = sphi 0, %s174
    %s191 = sphi 0, %s175
    %s197 = sphi 0, %s199
    %s200 = sphi 0, %s197
    %s201 = sphi 0, %s200
    %s217 = sphi 0, %s201
    %s223 = sphi 0, %s225
    %s226 = sphi 0, %s223
    %s227 = sphi 0, %s226
    %s243 = sphi 0, %s227
    %s249 = sphi 0, %s251
    %s252 = sphi 0, %s249
    %s253 = sphi 0, %s252
    %s269 = sphi 0, %s253
    %s275 = sphi 0, %s277
    %s278 = sphi 0, %s275
    %s279 = sphi 0, %s278
    %s295 = sphi 0, %s279
    %s301 = sphi 0, %s303
    %s304 = sphi 0, %s301
    %s305 = sphi 0, %s304
    %s321 = sphi 0, %s305
    %s327 = sphi 0, %s329
    %s330 = sphi 0, %s327
    %s331 = sphi 0, %s330
    %s347 = sphi 0, %s331
    %s353 = sphi 0, %s355
    %s356 = sphi 0, %s353
    %s357 = sphi 0, %s356
    %s373 = sphi 0, %s357
    %s379 = sphi 0, %s381
    %s382 = sphi 0, %s379
    %s383 = sphi 0, %s382
    %s399 = sphi 0, %s383
  $region4: #{transformer_forward.2} parent=0 // loop_header_branch
    %22 = sbr.rel (%p20) target = $region8
  $region5: #{transformer_forward.2} parent=0 // loop_body
    %s24 = ssub.s32 %s19, 1
    %s25 = ssub.s32 %s19, 2
    %s32 = sadd.s32 1, %s27
    %p33 = scmp.ge.s32.totalorder %s32, 2
    %s34 = scalar_select %p33, 0, %s32
    %s35 = sadd.s32 1, %s26
    %s36 = scalar_select %p33, %s35, %s26
    %p37 = scmp.ge.s32.totalorder %s36, 2
    %s38 = scalar_select %p37, 0, %s36
    %s39 = ssub.s32 %s26, %s38
    %p40 = scmp.eq.s32.totalorder %s39, 0
    %s42 = sadd.s32 %s41, 1
    %s43 = scalar_select %p40, %s41, %s42
    %p46 = pneg %p40
    %p47 = scmp.eq.s32.totalorder %s19, 3
    %p48 = por %p46, %p47
    %p49 = scmp.ne.s32.totalorder %s41, %s44
    %p50 = scmp.eq.s32.totalorder %s19, 0
    %p51 = por %p49, %p50
    %p52 = scmp.ne.s32.totalorder %s41, %s44
    %p53 = scmp.eq.s32.totalorder %s24, 3
    %p54 = por %p52, %p53
    %p55 = scmp.ne.s32.totalorder %s44, %s45
    %p56 = scmp.eq.s32.totalorder %s24, 0
    %p57 = por %p55, %p56
    %p58 = scmp.ne.s32.totalorder %s44, %s45
    %p59 = scmp.eq.s32.totalorder %s25, 3
    %p60 = por %p58, %p59
    %p62 = scmp.ne.s32.totalorder %s45, %s61
    %p63 = scmp.eq.s32.totalorder %s25, 0
    %p64 = por %p62, %p63
    %s65 = ssub.s32 %s27, %s34
    %p66 = scmp.eq.s32.totalorder %s65, 0
    %s68 = sadd.s32 %s67, 1
    %s69 = scalar_select %p66, %s67, %s68
    %p72 = pneg %p66
    %p73 = scmp.eq.s32.totalorder %s19, 3
    %p74 = por %p72, %p73
    %p75 = scmp.ne.s32.totalorder %s67, %s70
    %p76 = scmp.eq.s32.totalorder %s19, 0
    %p77 = por %p75, %p76
    %p78 = scmp.ne.s32.totalorder %s67, %s70
    %p79 = scmp.eq.s32.totalorder %s24, 3
    %p80 = por %p78, %p79
    %p81 = scmp.ne.s32.totalorder %s70, %s71
    %p82 = scmp.eq.s32.totalorder %s24, 0
    %p83 = por %p81, %p82
    %p84 = scmp.ne.s32.totalorder %s70, %s71
    %p85 = scmp.eq.s32.totalorder %s25, 3
    %p86 = por %p84, %p85
    %p88 = scmp.ne.s32.totalorder %s71, %s87
    %p89 = scmp.eq.s32.totalorder %s25, 0
    %p90 = por %p88, %p89
    %s91 = ssub.s32 %s27, %s34
    %p92 = scmp.eq.s32.totalorder %s91, 0
    %s94 = sadd.s32 %s93, 1
    %s95 = scalar_select %p92, %s93, %s94
    %p98 = pneg %p92
    %p99 = scmp.eq.s32.totalorder %s19, 3
    %p100 = por %p98, %p99
    %p101 = scmp.ne.s32.totalorder %s93, %s96
    %p102 = scmp.eq.s32.totalorder %s19, 0
    %p103 = por %p101, %p102
    %p104 = scmp.ne.s32.totalorder %s93, %s96
    %p105 = scmp.eq.s32.totalorder %s24, 3
    %p106 = por %p104, %p105
    %p107 = scmp.ne.s32.totalorder %s96, %s97
    %p108 = scmp.eq.s32.totalorder %s24, 0
    %p109 = por %p107, %p108
    %p110 = scmp.ne.s32.totalorder %s96, %s97
    %p111 = scmp.eq.s32.totalorder %s25, 3
    %p112 = por %p110, %p111
    %p114 = scmp.ne.s32.totalorder %s97, %s113
    %p115 = scmp.eq.s32.totalorder %s25, 0
    %p116 = por %p114, %p115
    %s117 = ssub.s32 %s27, %s34
    %p118 = scmp.eq.s32.totalorder %s117, 0
    %s120 = sadd.s32 %s119, 1
    %s121 = scalar_select %p118, %s119, %s120
    %p124 = pneg %p118
    %p125 = scmp.eq.s32.totalorder %s19, 3
    %p126 = por %p124, %p125
    %p127 = scmp.ne.s32.totalorder %s119, %s122
    %p128 = scmp.eq.s32.totalorder %s19, 0
    %p129 = por %p127, %p128
    %p130 = scmp.ne.s32.totalorder %s119, %s122
    %p131 = scmp.eq.s32.totalorder %s24, 3
    %p132 = por %p130, %p131
    %p133 = scmp.ne.s32.totalorder %s122, %s123
    %p134 = scmp.eq.s32.totalorder %s24, 0
    %p135 = por %p133, %p134
    %p136 = scmp.ne.s32.totalorder %s122, %s123
    %p137 = scmp.eq.s32.totalorder %s25, 3
    %p138 = por %p136, %p137
    %p140 = scmp.ne.s32.totalorder %s123, %s139
    %p141 = scmp.eq.s32.totalorder %s25, 0
    %p142 = por %p140, %p141
    %s143 = ssub.s32 %s27, %s34
    %p144 = scmp.eq.s32.totalorder %s143, 0
    %s146 = sadd.s32 %s145, 1
    %s147 = scalar_select %p144, %s145, %s146
    %p150 = pneg %p144
    %p151 = scmp.eq.s32.totalorder %s19, 3
    %p152 = por %p150, %p151
    %p153 = scmp.ne.s32.totalorder %s145, %s148
    %p154 = scmp.eq.s32.totalorder %s19, 0
    %p155 = por %p153, %p154
    %p156 = scmp.ne.s32.totalorder %s145, %s148
    %p157 = scmp.eq.s32.totalorder %s24, 3
    %p158 = por %p156, %p157
    %p159 = scmp.ne.s32.totalorder %s148, %s149
    %p160 = scmp.eq.s32.totalorder %s24, 0
    %p161 = por %p159, %p160
    %p162 = scmp.ne.s32.totalorder %s148, %s149
    %p163 = scmp.eq.s32.totalorder %s25, 3
    %p164 = por %p162, %p163
    %p166 = scmp.ne.s32.totalorder %s149, %s165
    %p167 = scmp.eq.s32.totalorder %s25, 0
    %p168 = por %p166, %p167
    %s169 = ssub.s32 %s27, %s34
    %p170 = scmp.eq.s32.totalorder %s169, 0
    %s172 = sadd.s32 %s171, 1
    %s173 = scalar_select %p170, %s171, %s172
    %p176 = pneg %p170
    %p177 = scmp.eq.s32.totalorder %s19, 3
    %p178 = por %p176, %p177
    %p179 = scmp.ne.s32.totalorder %s171, %s174
    %p180 = scmp.eq.s32.totalorder %s19, 0
    %p181 = por %p179, %p180
    %p182 = scmp.ne.s32.totalorder %s171, %s174
    %p183 = scmp.eq.s32.totalorder %s24, 3
    %p184 = por %p182, %p183
    %p185 = scmp.ne.s32.totalorder %s174, %s175
    %p186 = scmp.eq.s32.totalorder %s24, 0
    %p187 = por %p185, %p186
    %p188 = scmp.ne.s32.totalorder %s174, %s175
    %p189 = scmp.eq.s32.totalorder %s25, 3
    %p190 = por %p188, %p189
    %p192 = scmp.ne.s32.totalorder %s175, %s191
    %p193 = scmp.eq.s32.totalorder %s25, 0
    %p194 = por %p192, %p193
    %s195 = ssub.s32 %s27, %s34
    %p196 = scmp.eq.s32.totalorder %s195, 0
    %s198 = sadd.s32 %s197, 1
    %s199 = scalar_select %p196, %s197, %s198
    %p202 = pneg %p196
    %p203 = scmp.eq.s32.totalorder %s19, 3
    %p204 = por %p202, %p203
    %p205 = scmp.ne.s32.totalorder %s197, %s200
    %p206 = scmp.eq.s32.totalorder %s19, 0
    %p207 = por %p205, %p206
    %p208 = scmp.ne.s32.totalorder %s197, %s200
    %p209 = scmp.eq.s32.totalorder %s24, 3
    %p210 = por %p208, %p209
    %p211 = scmp.ne.s32.totalorder %s200, %s201
    %p212 = scmp.eq.s32.totalorder %s24, 0
    %p213 = por %p211, %p212
    %p214 = scmp.ne.s32.totalorder %s200, %s201
    %p215 = scmp.eq.s32.totalorder %s25, 3
    %p216 = por %p214, %p215
    %p218 = scmp.ne.s32.totalorder %s201, %s217
    %p219 = scmp.eq.s32.totalorder %s25, 0
    %p220 = por %p218, %p219
    %s221 = ssub.s32 %s27, %s34
    %p222 = scmp.eq.s32.totalorder %s221, 0
    %s224 = sadd.s32 %s223, 1
    %s225 = scalar_select %p222, %s223, %s224
    %p228 = pneg %p222
    %p229 = scmp.eq.s32.totalorder %s19, 3
    %p230 = por %p228, %p229
    %p231 = scmp.ne.s32.totalorder %s223, %s226
    %p232 = scmp.eq.s32.totalorder %s19, 0
    %p233 = por %p231, %p232
    %p234 = scmp.ne.s32.totalorder %s223, %s226
    %p235 = scmp.eq.s32.totalorder %s24, 3
    %p236 = por %p234, %p235
    %p237 = scmp.ne.s32.totalorder %s226, %s227
    %p238 = scmp.eq.s32.totalorder %s24, 0
    %p239 = por %p237, %p238
    %p240 = scmp.ne.s32.totalorder %s226, %s227
    %p241 = scmp.eq.s32.totalorder %s25, 3
    %p242 = por %p240, %p241
    %p244 = scmp.ne.s32.totalorder %s227, %s243
    %p245 = scmp.eq.s32.totalorder %s25, 0
    %p246 = por %p244, %p245
    %s247 = ssub.s32 %s27, %s34
    %p248 = scmp.eq.s32.totalorder %s247, 0
    %s250 = sadd.s32 %s249, 1
    %s251 = scalar_select %p248, %s249, %s250
    %p254 = pneg %p248
    %p255 = scmp.eq.s32.totalorder %s19, 3
    %p256 = por %p254, %p255
    %p257 = scmp.ne.s32.totalorder %s249, %s252
    %p258 = scmp.eq.s32.totalorder %s19, 0
    %p259 = por %p257, %p258
    %p260 = scmp.ne.s32.totalorder %s249, %s252
    %p261 = scmp.eq.s32.totalorder %s24, 3
    %p262 = por %p260, %p261
    %p263 = scmp.ne.s32.totalorder %s252, %s253
    %p264 = scmp.eq.s32.totalorder %s24, 0
    %p265 = por %p263, %p264
    %p266 = scmp.ne.s32.totalorder %s252, %s253
    %p267 = scmp.eq.s32.totalorder %s25, 3
    %p268 = por %p266, %p267
    %p270 = scmp.ne.s32.totalorder %s253, %s269
    %p271 = scmp.eq.s32.totalorder %s25, 0
    %p272 = por %p270, %p271
    %s273 = ssub.s32 %s27, %s34
    %p274 = scmp.eq.s32.totalorder %s273, 0
    %s276 = sadd.s32 %s275, 1
    %s277 = scalar_select %p274, %s275, %s276
    %p280 = pneg %p274
    %p281 = scmp.eq.s32.totalorder %s19, 3
    %p282 = por %p280, %p281
    %p283 = scmp.ne.s32.totalorder %s275, %s278
    %p284 = scmp.eq.s32.totalorder %s19, 0
    %p285 = por %p283, %p284
    %p286 = scmp.ne.s32.totalorder %s275, %s278
    %p287 = scmp.eq.s32.totalorder %s24, 3
    %p288 = por %p286, %p287
    %p289 = scmp.ne.s32.totalorder %s278, %s279
    %p290 = scmp.eq.s32.totalorder %s24, 0
    %p291 = por %p289, %p290
    %p292 = scmp.ne.s32.totalorder %s278, %s279
    %p293 = scmp.eq.s32.totalorder %s25, 3
    %p294 = por %p292, %p293
    %p296 = scmp.ne.s32.totalorder %s279, %s295
    %p297 = scmp.eq.s32.totalorder %s25, 0
    %p298 = por %p296, %p297
    %s299 = ssub.s32 %s27, %s34
    %p300 = scmp.eq.s32.totalorder %s299, 0
    %s302 = sadd.s32 %s301, 1
    %s303 = scalar_select %p300, %s301, %s302
    %p306 = pneg %p300
    %p307 = scmp.eq.s32.totalorder %s19, 3
    %p308 = por %p306, %p307
    %p309 = scmp.ne.s32.totalorder %s301, %s304
    %p310 = scmp.eq.s32.totalorder %s19, 0
    %p311 = por %p309, %p310
    %p312 = scmp.ne.s32.totalorder %s301, %s304
    %p313 = scmp.eq.s32.totalorder %s24, 3
    %p314 = por %p312, %p313
    %p315 = scmp.ne.s32.totalorder %s304, %s305
    %p316 = scmp.eq.s32.totalorder %s24, 0
    %p317 = por %p315, %p316
    %p318 = scmp.ne.s32.totalorder %s304, %s305
    %p319 = scmp.eq.s32.totalorder %s25, 3
    %p320 = por %p318, %p319
    %p322 = scmp.ne.s32.totalorder %s305, %s321
    %p323 = scmp.eq.s32.totalorder %s25, 0
    %p324 = por %p322, %p323
    %s325 = ssub.s32 %s27, %s34
    %p326 = scmp.eq.s32.totalorder %s325, 0
    %s328 = sadd.s32 %s327, 1
    %s329 = scalar_select %p326, %s327, %s328
    %p332 = pneg %p326
    %p333 = scmp.eq.s32.totalorder %s19, 3
    %p334 = por %p332, %p333
    %p335 = scmp.ne.s32.totalorder %s327, %s330
    %p336 = scmp.eq.s32.totalorder %s19, 0
    %p337 = por %p335, %p336
    %p338 = scmp.ne.s32.totalorder %s327, %s330
    %p339 = scmp.eq.s32.totalorder %s24, 3
    %p340 = por %p338, %p339
    %p341 = scmp.ne.s32.totalorder %s330, %s331
    %p342 = scmp.eq.s32.totalorder %s24, 0
    %p343 = por %p341, %p342
    %p344 = scmp.ne.s32.totalorder %s330, %s331
    %p345 = scmp.eq.s32.totalorder %s25, 3
    %p346 = por %p344, %p345
    %p348 = scmp.ne.s32.totalorder %s331, %s347
    %p349 = scmp.eq.s32.totalorder %s25, 0
    %p350 = por %p348, %p349
    %s351 = ssub.s32 %s27, %s34
    %p352 = scmp.eq.s32.totalorder %s351, 0
    %s354 = sadd.s32 %s353, 1
    %s355 = scalar_select %p352, %s353, %s354
    %p358 = pneg %p352
    %p359 = scmp.eq.s32.totalorder %s19, 3
    %p360 = por %p358, %p359
    %p361 = scmp.ne.s32.totalorder %s353, %s356
    %p362 = scmp.eq.s32.totalorder %s19, 0
    %p363 = por %p361, %p362
    %p364 = scmp.ne.s32.totalorder %s353, %s356
    %p365 = scmp.eq.s32.totalorder %s24, 3
    %p366 = por %p364, %p365
    %p367 = scmp.ne.s32.totalorder %s356, %s357
    %p368 = scmp.eq.s32.totalorder %s24, 0
    %p369 = por %p367, %p368
    %p370 = scmp.ne.s32.totalorder %s356, %s357
    %p371 = scmp.eq.s32.totalorder %s25, 3
    %p372 = por %p370, %p371
    %p374 = scmp.ne.s32.totalorder %s357, %s373
    %p375 = scmp.eq.s32.totalorder %s25, 0
    %p376 = por %p374, %p375
    %s377 = ssub.s32 %s26, %s38
    %p378 = scmp.eq.s32.totalorder %s377, 0
    %s380 = sadd.s32 %s379, 1
    %s381 = scalar_select %p378, %s379, %s380
    %p384 = pneg %p378
    %p385 = scmp.eq.s32.totalorder %s19, 3
    %p386 = por %p384, %p385
    %p387 = scmp.ne.s32.totalorder %s379, %s382
    %p388 = scmp.eq.s32.totalorder %s19, 0
    %p389 = por %p387, %p388
    %p390 = scmp.ne.s32.totalorder %s379, %s382
    %p391 = scmp.eq.s32.totalorder %s24, 3
    %p392 = por %p390, %p391
    %p393 = scmp.ne.s32.totalorder %s382, %s383
    %p394 = scmp.eq.s32.totalorder %s24, 0
    %p395 = por %p393, %p394
    %p396 = scmp.ne.s32.totalorder %s382, %s383
    %p397 = scmp.eq.s32.totalorder %s25, 3
    %p398 = por %p396, %p397
    %p400 = scmp.ne.s32.totalorder %s383, %s399
    %p401 = scmp.eq.s32.totalorder %s25, 0
    %p402 = por %p400, %p401
    %p403 = scmp.le.s32.totalorder 1, %s19
    %p404 = scmp.lt.s32.totalorder %s19, 5
    %p405 = pnand %p403, %p404
    %p406 = pneg %p405
    // Predicated region
    $region9: #{transformer_forward.2} parent=5 // pred_check
      _
    $region10: #{transformer_forward.2} parent=5 // pred_check_branch
      %408 = sbr.rel (%p405) target = $region12
    $region11: #{transformer_forward.2} parent=5 // pred_region
      %s409 = ssub.s32 %s19, 1
    $region12: #{transformer_forward.2} parent=5 // pred_fallthru
      _
    %p410 = scmp.lt.s32.totalorder %s19, 4
    // Predicated region
    $region13: #{transformer_forward.2} parent=5 // pred_check
      %p411 = pneg %p410
    $region14: #{transformer_forward.2} parent=5 // pred_check_branch
      %413 = sbr.rel (%p411) target = $region16
    $region15: #{transformer_forward.2} parent=5 // pred_region
      // Predicated region
      $region17: #{transformer_forward.2} parent=15 // pred_check
        %p414 = pneg %p51
      $region18: #{transformer_forward.2} parent=15 // pred_check_branch
        %416 = sbr.rel (%p414) target = $region20
      $region19: #{transformer_forward.2} parent=15 // pred_region
        %p417 = scmp.lt.s32.totalorder %s26, 1
        %s418 = scalar_select %p417, %s26, 1
        %s419 = smul.addr %s418, 8
        %s420 = scalar_lea.vmem %s0, %s419
      $region20: #{transformer_forward.2} parent=15 // pred_fallthru
        _
      // Predicated region
      $region21: #{transformer_forward.2} parent=15 // pred_check
        %p421 = pneg %p77
      $region22: #{transformer_forward.2} parent=15 // pred_check_branch
        %423 = sbr.rel (%p421) target = $region24
      $region23: #{transformer_forward.2} parent=15 // pred_region
        %p424 = scmp.lt.s32.totalorder %s27, 1
        %s425 = scalar_select %p424, %s27, 1
        %s426 = scalar_lea.vmem %s1, %s425
      $region24: #{transformer_forward.2} parent=15 // pred_fallthru
        _
      // Predicated region
      $region25: #{transformer_forward.2} parent=15 // pred_check
        %p427 = pneg %p103
      $region26: #{transformer_forward.2} parent=15 // pred_check_branch
        %429 = sbr.rel (%p427) target = $region28
      $region27: #{transformer_forward.2} parent=15 // pred_region
        %p430 = scmp.lt.s32.totalorder %s27, 1
        %s431 = scalar_select %p430, %s27, 1
        %s432 = scalar_lea.vmem %s2, %s431
      $region28: #{transformer_forward.2} parent=15 // pred_fallthru
        _
      // Predicated region
      $region29: #{transformer_forward.2} parent=15 // pred_check
        %p433 = pneg %p129
      $region30: #{transformer_forward.2} parent=15 // pred_check_branch
        %435 = sbr.rel (%p433) target = $region32
      $region31: #{transformer_forward.2} parent=15 // pred_region
        %p436 = scmp.lt.s32.totalorder %s27, 1
        %s437 = scalar_select %p436, %s27, 1
        %s438 = smul.addr %s437, 4
        %s439 = smul.addr %s438, 4
        %s440 = scalar_lea.vmem %s3, %s439
      $region32: #{transformer_forward.2} parent=15 // pred_fallthru
        _
      // Predicated region
      $region33: #{transformer_forward.2} parent=15 // pred_check
        %p441 = pneg %p155
      $region34: #{transformer_forward.2} parent=15 // pred_check_branch
        %443 = sbr.rel (%p441) target = $region36
      $region35: #{transformer_forward.2} parent=15 // pred_region
        %p444 = scmp.lt.s32.totalorder %s27, 1
        %s445 = scalar_select %p444, %s27, 1
        %s446 = scalar_lea.vmem %s4, %s445
      $region36: #{transformer_forward.2} parent=15 // pred_fallthru
        _
      // Predicated region
      $region37: #{transformer_forward.2} parent=15 // pred_check
        %p447 = pneg %p181
      $region38: #{transformer_forward.2} parent=15 // pred_check_branch
        %449 = sbr.rel (%p447) target = $region40
      $region39: #{transformer_forward.2} parent=15 // pred_region
        %p450 = scmp.lt.s32.totalorder %s27, 1
        %s451 = scalar_select %p450, %s27, 1
        %s452 = smul.addr %s451, 4
        %s453 = smul.addr %s452, 4
        %s454 = scalar_lea.vmem %s5, %s453
      $region40: #{transformer_forward.2} parent=15 // pred_fallthru
        _
      // Predicated region
      $region41: #{transformer_forward.2} parent=15 // pred_check
        %p455 = pneg %p207
      $region42: #{transformer_forward.2} parent=15 // pred_check_branch
        %457 = sbr.rel (%p455) target = $region44
      $region43: #{transformer_forward.2} parent=15 // pred_region
        %p458 = scmp.lt.s32.totalorder %s27, 1
        %s459 = scalar_select %p458, %s27, 1
        %s460 = scalar_lea.vmem %s6, %s459
      $region44: #{transformer_forward.2} parent=15 // pred_fallthru
        _
      // Predicated region
      $region45: #{transformer_forward.2} parent=15 // pred_check
        %p461 = pneg %p233
      $region46: #{transformer_forward.2} parent=15 // pred_check_branch
        %463 = sbr.rel (%p461) target = $region48
      $region47: #{transformer_forward.2} parent=15 // pred_region
        %p464 = scmp.lt.s32.totalorder %s27, 1
        %s465 = scalar_select %p464, %s27, 1
        %s466 = scalar_lea.vmem %s7, %s465
      $region48: #{transformer_forward.2} parent=15 // pred_fallthru
        _
      // Predicated region
      $region49: #{transformer_forward.2} parent=15 // pred_check
        %p467 = pneg %p259
      $region50: #{transformer_forward.2} parent=15 // pred_check_branch
        %469 = sbr.rel (%p467) target = $region52
      $region51: #{transformer_forward.2} parent=15 // pred_region
        %p470 = scmp.lt.s32.totalorder %s27, 1
        %s471 = scalar_select %p470, %s27, 1
        %s472 = scalar_lea.vmem %s8, %s471
      $region52: #{transformer_forward.2} parent=15 // pred_fallthru
        _
      // Predicated region
      $region53: #{transformer_forward.2} parent=15 // pred_check
        %p473 = pneg %p285
      $region54: #{transformer_forward.2} parent=15 // pred_check_branch
        %475 = sbr.rel (%p473) target = $region56
      $region55: #{transformer_forward.2} parent=15 // pred_region
        %p476 = scmp.lt.s32.totalorder %s27, 1
        %s477 = scalar_select %p476, %s27, 1
        %s478 = smul.addr %s477, 4
        %s479 = smul.addr %s478, 4
        %s480 = scalar_lea.vmem %s9, %s479
      $region56: #{transformer_forward.2} parent=15 // pred_fallthru
        _
      // Predicated region
      $region57: #{transformer_forward.2} parent=15 // pred_check
        %p481 = pneg %p311
      $region58: #{transformer_forward.2} parent=15 // pred_check_branch
        %483 = sbr.rel (%p481) target = $region60
      $region59: #{transformer_forward.2} parent=15 // pred_region
        %p484 = scmp.lt.s32.totalorder %s27, 1
        %s485 = scalar_select %p484, %s27, 1
        %s486 = scalar_lea.vmem %s10, %s485
      $region60: #{transformer_forward.2} parent=15 // pred_fallthru
        _
      // Predicated region
      $region61: #{transformer_forward.2} parent=15 // pred_check
        %p487 = pneg %p337
      $region62: #{transformer_forward.2} parent=15 // pred_check_branch
        %489 = sbr.rel (%p487) target = $region64
      $region63: #{transformer_forward.2} parent=15 // pred_region
        %p490 = scmp.lt.s32.totalorder %s27, 1
        %s491 = scalar_select %p490, %s27, 1
        %s492 = smul.addr %s491, 16
        %s493 = smul.addr %s492, 4
        %s494 = scalar_lea.vmem %s11, %s493
      $region64: #{transformer_forward.2} parent=15 // pred_fallthru
        _
      // Predicated region
      $region65: #{transformer_forward.2} parent=15 // pred_check
        %p495 = pneg %p363
      $region66: #{transformer_forward.2} parent=15 // pred_check_branch
        %497 = sbr.rel (%p495) target = $region68
      $region67: #{transformer_forward.2} parent=15 // pred_region
        %p498 = scmp.lt.s32.totalorder %s27, 1
        %s499 = scalar_select %p498, %s27, 1
        %s500 = scalar_lea.vmem %s12, %s499
      $region68: #{transformer_forward.2} parent=15 // pred_fallthru
        _
    $region16: #{transformer_forward.2} parent=5 // pred_fallthru
      _
    %p501 = scmp.le.s32.totalorder 1, %s19
    %p502 = scmp.lt.s32.totalorder %s19, 5
    %p503 = pnand %p501, %p502
    %p504 = pneg %p503
    // Predicated region
    $region69: #{transformer_forward.2} parent=5 // pred_check
      _
    $region70: #{transformer_forward.2} parent=5 // pred_check_branch
      %506 = sbr.rel (%p503) target = $region72
    $region71: #{transformer_forward.2} parent=5 // pred_region
      %s507 = ssub.s32 %s19, 1
      %p508 = scmp.lt.s32.totalorder %s28, 1
      %s509 = scalar_select %p508, %s28, 1
      %s510 = smul.addr %s509, 8
      %s511 = scalar_lea.vmem %s0, %s510
      %p512 = pneg %p57
      %p513 = pneg %p54
      %p514 = scmp.lt.s32.totalorder %s29, 1
      %s515 = scalar_select %p514, %s29, 1
      %s516 = scalar_lea.vmem %s1, %s515
      %p517 = pneg %p83
      %p518 = pneg %p80
      %p519 = scmp.lt.s32.totalorder %s29, 1
      %s520 = scalar_select %p519, %s29, 1
      %s521 = scalar_lea.vmem %s2, %s520
      %p522 = pneg %p109
      %p523 = pneg %p106
      %p524 = scmp.lt.s32.totalorder %s29, 1
      %s525 = scalar_select %p524, %s29, 1
      %s526 = smul.addr %s525, 4
      %s527 = smul.addr %s526, 4
      %s528 = scalar_lea.vmem %s3, %s527
      %p529 = pneg %p135
      %p530 = pneg %p132
      %p531 = scmp.lt.s32.totalorder %s29, 1
      %s532 = scalar_select %p531, %s29, 1
      %s533 = scalar_lea.vmem %s4, %s532
      %p534 = pneg %p161
      %p535 = pneg %p158
      %p536 = scmp.lt.s32.totalorder %s29, 1
      %s537 = scalar_select %p536, %s29, 1
      %s538 = smul.addr %s537, 4
      %s539 = smul.addr %s538, 4
      %s540 = scalar_lea.vmem %s5, %s539
      %p541 = pneg %p187
      %p542 = pneg %p184
      %p543 = scmp.lt.s32.totalorder %s29, 1
      %s544 = scalar_select %p543, %s29, 1
      %s545 = scalar_lea.vmem %s6, %s544
      %p546 = pneg %p213
      %p547 = pneg %p210
      %p548 = scmp.lt.s32.totalorder %s29, 1
      %s549 = scalar_select %p548, %s29, 1
      %s550 = scalar_lea.vmem %s7, %s549
      %p551 = pneg %p239
      %p552 = pneg %p236
      %p553 = scmp.lt.s32.totalorder %s29, 1
      %s554 = scalar_select %p553, %s29, 1
      %s555 = scalar_lea.vmem %s8, %s554
      %p556 = pneg %p265
      %p557 = pneg %p262
      %p558 = scmp.lt.s32.totalorder %s29, 1
      %s559 = scalar_select %p558, %s29, 1
      %s560 = smul.addr %s559, 4
      %s561 = smul.addr %s560, 4
      %s562 = scalar_lea.vmem %s9, %s561
      %p563 = pneg %p291
      %p564 = pneg %p288
      %p565 = scmp.lt.s32.totalorder %s29, 1
      %s566 = scalar_select %p565, %s29, 1
      %s567 = scalar_lea.vmem %s10, %s566
      %p568 = pneg %p317
      %p569 = pneg %p314
      %p570 = scmp.lt.s32.totalorder %s29, 1
      %s571 = scalar_select %p570, %s29, 1
      %s572 = smul.addr %s571, 16
      %s573 = smul.addr %s572, 4
      %s574 = scalar_lea.vmem %s11, %s573
      %p575 = pneg %p343
      %p576 = pneg %p340
      %p577 = scmp.lt.s32.totalorder %s29, 1
      %s578 = scalar_select %p577, %s29, 1
      %s579 = scalar_lea.vmem %s12, %s578
      %p580 = pneg %p369
      %p581 = pneg %p366
      %p582 = pneg %p395
      %p583 = pneg %p392
      %p584 = scmp.lt.s32.totalorder %s28, 1
      %s585 = scalar_select %p584, %s28, 1
      %s586 = smul.addr %s585, 8
      %s587 = scalar_lea.vmem %s13, %s586
      %p588 = scmp.lt.s32.totalorder %s28, 1
      %s589 = scalar_select %p588, %s28, 1
      %s590 = smul.addr %s589, 8
      %s591 = scalar_lea.vmem %s0, %s590
      %p592 = scmp.lt.s32.totalorder %s29, 1
      %s593 = scalar_select %p592, %s29, 1
      %s594 = scalar_lea.vmem %s1, %s593
      %p595 = scmp.lt.s32.totalorder %s29, 1
      %s596 = scalar_select %p595, %s29, 1
      %s597 = scalar_lea.vmem %s2, %s596
      %p598 = scmp.lt.s32.totalorder %s29, 1
      %s599 = scalar_select %p598, %s29, 1
      %s600 = smul.addr %s599, 4
      %s601 = smul.addr %s600, 4
      %s602 = scalar_lea.vmem %s3, %s601
      %p603 = scmp.lt.s32.totalorder %s29, 1
      %s604 = scalar_select %p603, %s29, 1
      %s605 = scalar_lea.vmem %s4, %s604
      %p606 = scmp.lt.s32.totalorder %s29, 1
      %s607 = scalar_select %p606, %s29, 1
      %s608 = smul.addr %s607, 4
      %s609 = smul.addr %s608, 4
      %s610 = scalar_lea.vmem %s5, %s609
      %p611 = scmp.lt.s32.totalorder %s29, 1
      %s612 = scalar_select %p611, %s29, 1
      %s613 = scalar_lea.vmem %s6, %s612
      %p614 = scmp.lt.s32.totalorder %s29, 1
      %s615 = scalar_select %p614, %s29, 1
      %s616 = scalar_lea.vmem %s7, %s615
      %p617 = scmp.lt.s32.totalorder %s29, 1
      %s618 = scalar_select %p617, %s29, 1
      %s619 = scalar_lea.vmem %s8, %s618
      %p620 = scmp.lt.s32.totalorder %s29, 1
      %s621 = scalar_select %p620, %s29, 1
      %s622 = smul.addr %s621, 4
      %s623 = smul.addr %s622, 4
      %s624 = scalar_lea.vmem %s9, %s623
      %p625 = scmp.lt.s32.totalorder %s29, 1
      %s626 = scalar_select %p625, %s29, 1
      %s627 = scalar_lea.vmem %s10, %s626
      %p628 = scmp.lt.s32.totalorder %s29, 1
      %s629 = scalar_select %p628, %s29, 1
      %s630 = smul.addr %s629, 16
      %s631 = smul.addr %s630, 4
      %s632 = scalar_lea.vmem %s11, %s631
      %p633 = scmp.lt.s32.totalorder %s29, 1
      %s634 = scalar_select %p633, %s29, 1
      %s635 = scalar_lea.vmem %s12, %s634
      %p636 = scmp.lt.s32.totalorder %s28, 1
      %s637 = scalar_select %p636, %s28, 1
      %s638 = smul.addr %s637, 8
      %s639 = scalar_lea.vmem %s13, %s638
      %p641 = scmp.eq.s32.totalorder %s29, 0
      // Predicated region
      $region73: #{transformer_forward.2} parent=71 // pred_check
        %p642 = pneg %p641
      $region74: #{transformer_forward.2} parent=71 // pred_check_branch
        %644 = sbr.rel (%p642) target = $region76
      $region75: #{transformer_forward.2} parent=71 // pred_region
        %v645 = vld [vmem:[%s591] sm:$0xff]
        %vm646 = vcmask 261120
        %647 = vst.msk [vmem:[%s639] sm:$0xff] %vm646, %v645
      $region76: #{transformer_forward.2} parent=71 // pred_fallthru
        _
      %v648 = vld [vmem:[%s639] sm:$0xff]
      %v649 = vld [vmem:[%s594] sm:$0x1]
      %v650 = vld [vmem:[%s597] sm:$0x1]
      %vm651 = vcmask 261120
      %v652 = vsel %vm651, %v648, 0.0
      %653 = vadd.xlane.f32.xlu0 %v652
      %v654 = vpop.xlane.xlu0 %653
      %v655 = vrcp.pop 32.0
      %v656 = vmul.f32 32.0, %v655
      %v657 = vsub.f32 1.0, %v656
      %v658 = vmul.f32 %v655, %v657
      %v659 = vadd.f32 %v655, %v658
      %vm660 = vweird.f32 %v655
      %v661 = vsel %vm660, %v655, %v659
      %v662 = vmul.f32 %v654, %v661
      %v663 = vsub.f32 %v648, %v662
      %v664 = vmul.f32 %v663, %v663
      %v665 = vsel %vm651, %v664, 0.0
      %666 = vadd.xlane.f32.xlu0 %v665
      %v667 = vpop.xlane.xlu0 %666
      %v668 = vmul.f32 %v667, %v661
      %v669 = vadd.f32 %v668, 1e-05
      %v670 = vrsqrt.pop %v669
      %v671 = vmul.f32 %v670, %v669
      %v672 = vmul.f32 %v671, %v670
      %v673 = vmul.f32 0.5, %v672
      %v674 = vsub.f32 1.5, %v673
      %v675 = vmul.f32 %v670, %v674
      %vm676 = vweird.f32 %v669
      %vm677 = vweird.f32 %v670
      %vm678 = vmor %vm676, %vm677
      %v679 = vsel %vm678, %v670, %v675
      %v680 = vmul.f32 %v663, %v679
      %v682 = vperm.slane %v649, 0
      %v684 = vmul.f32 %v680, %v682
      %v686 = vperm.slane %v650, 0
      %v688 = vadd.f32 %v684, %v686
      %v689 = vpack.c.bf16 %v688, %v688
      %v690 = vld [vmem:[%s602] sm:$0xf]
      %v691 = vld [vmem:[%s602 + $0x4] sm:$0xf]
      %v692 = vld [vmem:[%s602 + $0x8] sm:$0xf]
      %v693 = vld [vmem:[%s602 + $0xc] sm:$0xf]
      %v694 = vld [vmem:[%s605] sm:$0x1]
      %v696 = vperm.slane %v694, 0
      %v702 = vunpack.c.l.b16 %v690
      %v703 = vunpack.c.l.b16 %v691
      %v704 = vunpack.c.l.b16 %v692
      %v705 = vunpack.c.l.b16 %v693
      %v706 = vpack.c.b16 %v703, %v702
      %v707 = vpack.c.b16 %v705, %v704
      %v711 = vsel %vm651, %v689, 0
      %713 = vmatpush.bf16.msra.mxu0 0
      %714 = vmatpush.bf16.msra.mxu0 0
      %715 = vmatpush.bf16.msra.mxu0 0
      %716 = vmatpush.bf16.msra.mxu0 0
      %717 = vmatpush.bf16.msra.mxu0 0
      %718 = vmatpush.bf16.msra.mxu0 0
      %719 = vmatpush.bf16.msra.mxu0 %v707
      %720 = vmatpush.bf16.msra.mxu0 %v706
      %721 = vmatmul.bf16.gmra.mxu0 %v711
      %v722 = vpop.f32.mrf.mxu0
      %v723 = vadd.f32 %v696, %v722
      %v724 = vpop.f32.mrf.mxu0
      %725 = vdwg.mxu0
      %727 = vrot.lane.b32.xlu0 %v723, 120
      %v728 = vpop.permute.xlu0 %727
      %730 = vrot.lane.b32.xlu0 %v723, 112
      %v731 = vpop.permute.xlu0 %730
      %733 = vrot.lane.b32.xlu0 %v723, 104
      %v734 = vpop.permute.xlu0 %733
      %v736 = vpack.c.bf16 %v723, %v723
      %v737 = vpack.c.bf16 %v728, %v728
      %v738 = vpack.c.bf16 %v731, %v731
      %v739 = vpack.c.bf16 %v734, %v734
      %v741 = vunpack.c.l.b16 %v736
      %v742 = vpack.c.b16 %v741, %v741
      %743 = vrot.lane.b32.xlu0 %v742, 96
      %v744 = vpop.permute.xlu0 %743
      %vm745 = vcmask 64512
      %v747 = vsel %vm745, %v736, 0
      %v750 = vsel %vm745, %v744, 0
      %752 = vmatpush.bf16.xpose.msra.mxu0 0
      %753 = vmatpush.bf16.xpose.msra.mxu0 0
      %754 = vmatpush.bf16.xpose.msra.mxu0 0
      %755 = vmatpush.bf16.xpose.msra.mxu0 0
      %756 = vmatpush.bf16.xpose.msra.mxu0 0
      %757 = vmatpush.bf16.xpose.msra.mxu0 0
      %758 = vmatpush.bf16.xpose.msra.mxu0 0
      %759 = vmatpush.bf16.xpose.msra.mxu0 %v750
      %760 = vmatmul.bf16.gmra.mxu0 %v747
      %v761 = vpop.f32.mrf.mxu0
      %v762 = vadd.f32 0.0, %v761
      %v763 = vpop.f32.mrf.mxu0
      %764 = vdwg.mxu0
      %v766 = vunpack.c.l.b16 %v737
      %v767 = vpack.c.b16 %v766, %v766
      %768 = vrot.lane.b32.xlu0 %v767, 96
      %v769 = vpop.permute.xlu0 %768
      %v771 = vsel %vm745, %v737, 0
      %v774 = vsel %vm745, %v769, 0
      %776 = vmatpush.bf16.xpose.msra.mxu0 0
      %777 = vmatpush.bf16.xpose.msra.mxu0 0
      %778 = vmatpush.bf16.xpose.msra.mxu0 0
      %779 = vmatpush.bf16.xpose.msra.mxu0 0
      %780 = vmatpush.bf16.xpose.msra.mxu0 0
      %781 = vmatpush.bf16.xpose.msra.mxu0 0
      %782 = vmatpush.bf16.xpose.msra.mxu0 0
      %783 = vmatpush.bf16.xpose.msra.mxu0 %v774
      %784 = vmatmul.bf16.gmra.mxu0 %v771
      %v785 = vpop.f32.mrf.mxu0
      %v786 = vadd.f32 0.0, %v785
      %v787 = vpop.f32.mrf.mxu0
      %788 = vdwg.mxu0
      %v790 = vunpack.c.l.b16 %v738
      %v791 = vpack.c.b16 %v790, %v790
      %792 = vrot.lane.b32.xlu0 %v791, 96
      %v793 = vpop.permute.xlu0 %792
      %v795 = vsel %vm745, %v738, 0
      %v798 = vsel %vm745, %v793, 0
      %800 = vmatpush.bf16.xpose.msra.mxu0 0
      %801 = vmatpush.bf16.xpose.msra.mxu0 0
      %802 = vmatpush.bf16.xpose.msra.mxu0 0
      %803 = vmatpush.bf16.xpose.msra.mxu0 0
      %804 = vmatpush.bf16.xpose.msra.mxu0 0
      %805 = vmatpush.bf16.xpose.msra.mxu0 0
      %806 = vmatpush.bf16.xpose.msra.mxu0 0
      %807 = vmatpush.bf16.xpose.msra.mxu0 %v798
      %808 = vmatmul.bf16.gmra.mxu0 %v795
      %v809 = vpop.f32.mrf.mxu0
      %v810 = vadd.f32 0.0, %v809
      %v811 = vpop.f32.mrf.mxu0
      %812 = vdwg.mxu0
      %v814 = vunpack.c.l.b16 %v739
      %v815 = vpack.c.b16 %v814, %v814
      %816 = vrot.lane.b32.xlu0 %v815, 96
      %v817 = vpop.permute.xlu0 %816
      %v819 = vsel %vm745, %v739, 0
      %v822 = vsel %vm745, %v817, 0
      %824 = vmatpush.bf16.xpose.msra.mxu0 0
      %825 = vmatpush.bf16.xpose.msra.mxu0 0
      %826 = vmatpush.bf16.xpose.msra.mxu0 0
      %827 = vmatpush.bf16.xpose.msra.mxu0 0
      %828 = vmatpush.bf16.xpose.msra.mxu0 0
      %829 = vmatpush.bf16.xpose.msra.mxu0 0
      %830 = vmatpush.bf16.xpose.msra.mxu0 0
      %831 = vmatpush.bf16.xpose.msra.mxu0 %v822
      %832 = vmatmul.bf16.gmra.mxu0 %v819
      %v833 = vpop.f32.mrf.mxu0
      %v834 = vadd.f32 0.0, %v833
      %v835 = vpop.f32.mrf.mxu0
      %836 = vdwg.mxu0
      %v837 = vmul.f32 %v762, 0.35355338
      %v838 = vmul.f32 %v786, 0.35355338
      %v839 = vmul.f32 %v810, 0.35355338
      %v840 = vmul.f32 %v834, 0.35355338
      %v841 = vlaneseq
      %v842 = vshrl.u32 %v841, 7
      %v843 = vlaneseq
      %v844 = vand.u32 %v843, 127
      %vm845 = vcmp.le.s32.totalorder %v844, %v842
      %v846 = vsel %vm845, 1, 0
      %vm847 = vcmp.eq.s32.totalorder %v846, 1
      %v848 = vsel %vm847, %v837, -1e+30
      %v849 = vsel %vm847, %v838, -1e+30
      %v850 = vsel %vm847, %v839, -1e+30
      %v851 = vsel %vm847, %v840, -1e+30
      %v852 = vsel %vm745, %v848, -inf
      %853 = vmax.xlane.f32.xlu0 %v852
      %v854 = vpop.xlane.xlu0 %853
      %v855 = vsel %vm745, %v849, -inf
      %856 = vmax.xlane.f32.xlu0 %v855
      %v857 = vpop.xlane.xlu0 %856
      %v858 = vsel %vm745, %v850, -inf
      %859 = vmax.xlane.f32.xlu0 %v858
      %v860 = vpop.xlane.xlu0 %859
      %v861 = vsel %vm745, %v851, -inf
      %862 = vmax.xlane.f32.xlu0 %v861
      %v863 = vpop.xlane.xlu0 %862
      %v864 = vsub.f32 %v848, %v854
      %v865 = vsub.f32 %v849, %v857
      %v866 = vsub.f32 %v850, %v860
      %v867 = vsub.f32 %v851, %v863
      %v868 = vmul.f32 %v864, 1.442695
      %v869 = vpow.pop %v868
      %v870 = vmul.f32 %v865, 1.442695
      %v871 = vpow.pop %v870
      %v872 = vmul.f32 %v866, 1.442695
      %v873 = vpow.pop %v872
      %v874 = vmul.f32 %v867, 1.442695
      %v875 = vpow.pop %v874
      %v876 = vsel %vm745, %v869, 0.0
      %877 = vadd.xlane.f32.xlu0 %v876
      %v878 = vpop.xlane.xlu0 %877
      %v879 = vsel %vm745, %v871, 0.0
      %880 = vadd.xlane.f32.xlu0 %v879
      %v881 = vpop.xlane.xlu0 %880
      %v882 = vsel %vm745, %v873, 0.0
      %883 = vadd.xlane.f32.xlu0 %v882
      %v884 = vpop.xlane.xlu0 %883
      %v885 = vsel %vm745, %v875, 0.0
      %886 = vadd.xlane.f32.xlu0 %v885
      %v887 = vpop.xlane.xlu0 %886
      %v888 = vrcp.pop %v878
      %v889 = vrcp.pop %v881
      %v890 = vrcp.pop %v884
      %v891 = vrcp.pop %v887
      %v892 = vmul.f32 %v869, %v888
      %v893 = vmul.f32 %v871, %v889
      %v894 = vmul.f32 %v873, %v890
      %v895 = vmul.f32 %v875, %v891
      %v896 = vpack.c.bf16 %v892, %v892
      %v897 = vpack.c.bf16 %v893, %v893
      %v898 = vpack.c.bf16 %v894, %v894
      %v899 = vpack.c.bf16 %v895, %v895
      %900 = vrot.lane.b32.xlu0 %v742, 64
      %v901 = vpop.permute.xlu0 %900
      %v903 = vsel %vm745, %v896, 0
      %vm905 = vcmask 1043456
      %v907 = vsel %vm905, %v901, 0
      %909 = vmatpush.bf16.msra.mxu0 0
      %910 = vmatpush.bf16.msra.mxu0 0
      %911 = vmatpush.bf16.msra.mxu0 0
      %912 = vmatpush.bf16.msra.mxu0 0
      %913 = vmatpush.bf16.msra.mxu0 0
      %914 = vmatpush.bf16.msra.mxu0 0
      %915 = vmatpush.bf16.msra.mxu0 0
      %916 = vmatpush.bf16.msra.mxu0 %v907
      %917 = vmatmul.bf16.gmra.mxu0 %v903
      %v918 = vpop.f32.mrf.mxu0
      %v919 = vadd.f32 0.0, %v918
      %v920 = vpop.f32.mrf.mxu0
      %921 = vdwg.mxu0
      %922 = vrot.lane.b32.xlu0 %v767, 64
      %v923 = vpop.permute.xlu0 %922
      %v925 = vsel %vm745, %v897, 0
      %v928 = vsel %vm905, %v923, 0
      %930 = vmatpush.bf16.msra.mxu0 0
      %931 = vmatpush.bf16.msra.mxu0 0
      %932 = vmatpush.bf16.msra.mxu0 0
      %933 = vmatpush.bf16.msra.mxu0 0
      %934 = vmatpush.bf16.msra.mxu0 0
      %935 = vmatpush.bf16.msra.mxu0 0
      %936 = vmatpush.bf16.msra.mxu0 0
      %937 = vmatpush.bf16.msra.mxu0 %v928
      %938 = vmatmul.bf16.gmra.mxu0 %v925
      %v939 = vpop.f32.mrf.mxu0
      %v940 = vadd.f32 0.0, %v939
      %v941 = vpop.f32.mrf.mxu0
      %942 = vdwg.mxu0
      %943 = vrot.lane.b32.xlu0 %v791, 64
      %v944 = vpop.permute.xlu0 %943
      %v946 = vsel %vm745, %v898, 0
      %v949 = vsel %vm905, %v944, 0
      %951 = vmatpush.bf16.msra.mxu0 0
      %952 = vmatpush.bf16.msra.mxu0 0
      %953 = vmatpush.bf16.msra.mxu0 0
      %954 = vmatpush.bf16.msra.mxu0 0
      %955 = vmatpush.bf16.msra.mxu0 0
      %956 = vmatpush.bf16.msra.mxu0 0
      %957 = vmatpush.bf16.msra.mxu0 0
      %958 = vmatpush.bf16.msra.mxu0 %v949
      %959 = vmatmul.bf16.gmra.mxu0 %v946
      %v960 = vpop.f32.mrf.mxu0
      %v961 = vadd.f32 0.0, %v960
      %v962 = vpop.f32.mrf.mxu0
      %963 = vdwg.mxu0
      %964 = vrot.lane.b32.xlu0 %v815, 64
      %v965 = vpop.permute.xlu0 %964
      %v967 = vsel %vm745, %v899, 0
      %v970 = vsel %vm905, %v965, 0
      %972 = vmatpush.bf16.msra.mxu0 0
      %973 = vmatpush.bf16.msra.mxu0 0
      %974 = vmatpush.bf16.msra.mxu0 0
      %975 = vmatpush.bf16.msra.mxu0 0
      %976 = vmatpush.bf16.msra.mxu0 0
      %977 = vmatpush.bf16.msra.mxu0 0
      %978 = vmatpush.bf16.msra.mxu0 0
      %979 = vmatpush.bf16.msra.mxu0 %v970
      %980 = vmatmul.bf16.gmra.mxu0 %v967
      %v981 = vpop.f32.mrf.mxu0
      %v982 = vadd.f32 0.0, %v981
      %v983 = vpop.f32.mrf.mxu0
      %984 = vdwg.mxu0
      %986 = vrot.lane.b32.xlu0 %v940, 8
      %v987 = vpop.permute.xlu0 %986
      %990 = vrot.lane.b32.xlu0 %v961, 16
      %v991 = vpop.permute.xlu0 %990
      %994 = vrot.lane.b32.xlu0 %v982, 24
      %v995 = vpop.permute.xlu0 %994
      %v997 = vsel %vm745, %v919, %v987
      %vm998 = vcmask 130048
      %v999 = vsel %vm998, %v997, %v991
      %vm1000 = vcmask 195584
      %v1001 = vsel %vm1000, %v999, %v995
      %v1002 = vpack.c.bf16 %v1001, %v1001
      %v1003 = vld [vmem:[%s610] sm:$0xf]
      %v1004 = vld [vmem:[%s610 + $0x4] sm:$0xf]
      %v1005 = vld [vmem:[%s610 + $0x8] sm:$0xf]
      %v1006 = vld [vmem:[%s610 + $0xc] sm:$0xf]
      %v1007 = vld [vmem:[%s613] sm:$0x1]
      %v1009 = vperm.slane %v1007, 0
      %v1015 = vunpack.c.l.b16 %v1003
      %v1016 = vunpack.c.l.b16 %v1004
      %v1017 = vunpack.c.l.b16 %v1005
      %v1018 = vunpack.c.l.b16 %v1006
      %v1019 = vpack.c.b16 %v1016, %v1015
      %v1020 = vpack.c.b16 %v1018, %v1017
      %v1024 = vsel %vm651, %v1002, 0
      %1026 = vmatpush.bf16.msra.mxu0 0
      %1027 = vmatpush.bf16.msra.mxu0 0
      %1028 = vmatpush.bf16.msra.mxu0 0
      %1029 = vmatpush.bf16.msra.mxu0 0
      %1030 = vmatpush.bf16.msra.mxu0 0
      %1031 = vmatpush.bf16.msra.mxu0 0
      %1032 = vmatpush.bf16.msra.mxu0 %v1020
      %1033 = vmatpush.bf16.msra.mxu0 %v1019
      %1034 = vmatmul.bf16.gmra.mxu0 %v1024
      %v1035 = vpop.f32.mrf.mxu0
      %v1036 = vadd.f32 %v1009, %v1035
      %v1037 = vpop.f32.mrf.mxu0
      %1038 = vdwg.mxu0
      %v1039 = vadd.f32 %v648, %v1036
      %v1040 = vld [vmem:[%s616] sm:$0x1]
      %v1041 = vld [vmem:[%s619] sm:$0x1]
      %v1042 = vsel %vm651, %v1039, 0.0
      %1043 = vadd.xlane.f32.xlu0 %v1042
      %v1044 = vpop.xlane.xlu0 %1043
      %v1045 = vmul.f32 %v1044, %v661
      %v1046 = vsub.f32 %v1039, %v1045
      %v1047 = vmul.f32 %v1046, %v1046
      %v1048 = vsel %vm651, %v1047, 0.0
      %1049 = vadd.xlane.f32.xlu0 %v1048
      %v1050 = vpop.xlane.xlu0 %1049
      %v1051 = vmul.f32 %v1050, %v661
      %v1052 = vadd.f32 %v1051, 1e-05
      %v1053 = vrsqrt.pop %v1052
      %v1054 = vmul.f32 %v1053, %v1052
      %v1055 = vmul.f32 %v1054, %v1053
      %v1056 = vmul.f32 0.5, %v1055
      %v1057 = vsub.f32 1.5, %v1056
      %v1058 = vmul.f32 %v1053, %v1057
      %vm1059 = vweird.f32 %v1052
      %vm1060 = vweird.f32 %v1053
      %vm1061 = vmor %vm1059, %vm1060
      %v1062 = vsel %vm1061, %v1053, %v1058
      %v1063 = vmul.f32 %v1046, %v1062
      %v1065 = vperm.slane %v1040, 0
      %v1067 = vmul.f32 %v1063, %v1065
      %v1069 = vperm.slane %v1041, 0
      %v1071 = vadd.f32 %v1067, %v1069
      %v1072 = vpack.c.bf16 %v1071, %v1071
      %v1073 = vld [vmem:[%s624] sm:$0xf]
      %v1074 = vld [vmem:[%s624 + $0x4] sm:$0xf]
      %v1075 = vld [vmem:[%s624 + $0x8] sm:$0xf]
      %v1076 = vld [vmem:[%s624 + $0xc] sm:$0xf]
      %v1077 = vld [vmem:[%s627] sm:$0x1]
      %v1079 = vperm.slane %v1077, 0
      %v1085 = vunpack.c.l.b16 %v1073
      %v1086 = vunpack.c.l.b16 %v1074
      %v1087 = vunpack.c.l.b16 %v1075
      %v1088 = vunpack.c.l.b16 %v1076
      %v1089 = vpack.c.b16 %v1086, %v1085
      %v1090 = vpack.c.b16 %v1088, %v1087
      %v1094 = vsel %vm651, %v1072, 0
      %1096 = vmatpush.bf16.msra.mxu0 0
      %1097 = vmatpush.bf16.msra.mxu0 0
      %1098 = vmatpush.bf16.msra.mxu0 0
      %1099 = vmatpush.bf16.msra.mxu0 0
      %1100 = vmatpush.bf16.msra.mxu0 0
      %1101 = vmatpush.bf16.msra.mxu0 0
      %1102 = vmatpush.bf16.msra.mxu0 %v1090
      %1103 = vmatpush.bf16.msra.mxu0 %v1089
      %1104 = vmatmul.bf16.gmra.mxu0 %v1094
      %v1105 = vpop.f32.mrf.mxu0
      %v1106 = vadd.f32 %v1079, %v1105
      %v1107 = vpop.f32.mrf.mxu0
      %1108 = vdwg.mxu0
      %v1109 = vmul.f32 %v1106, 0.5
      %v1110 = vmul.f32 %v1106, 0.70710677
      %v1111 = vmul.f32 %v1110, %v1110
      %v1112 = vmin.f32 16.0, %v1111
      %v1113 = vmul.f32 %v1112, 2.1237322e-06
      %v1114 = vadd.f32 %v1113, 0.00028619796
      %v1115 = vmul.f32 %v1112, %v1114
      %v1116 = vadd.f32 %v1115, 0.0036580483
      %v1117 = vmul.f32 %v1112, %v1116
      %v1118 = vadd.f32 %v1117, 0.05243302
      %v1119 = vmul.f32 %v1112, %v1118
      %v1120 = vadd.f32 %v1119, 0.18741608
      %v1121 = vmul.f32 %v1112, %v1120
      %v1122 = vadd.f32 %v1121, 1.1283791
      %v1123 = vmul.f32 %v1110, %v1122
      %v1124 = vmul.f32 %v1112, 3.8918573e-05
      %v1125 = vadd.f32 %v1124, 0.001143296
      %v1126 = vmul.f32 %v1112, %v1125
      %v1127 = vadd.f32 %v1126, 0.014752088
      %v1128 = vmul.f32 %v1112, %v1127
      %v1129 = vadd.f32 %v1128, 0.112945676
      %v1130 = vmul.f32 %v1112, %v1129
      %v1131 = vadd.f32 %v1130, 0.4994258
      %v1132 = vmul.f32 %v1112, %v1131
      %v1133 = vadd.f32 %v1132, 1.0
      %v1134 = vrcp.pop %v1133
      %v1135 = vmul.f32 %v1133, %v1134
      %v1136 = vsub.f32 1.0, %v1135
      %v1137 = vmul.f32 %v1134, %v1136
      %v1138 = vadd.f32 %v1134, %v1137
      %vm1139 = vweird.f32 %v1133
      %vm1140 = vweird.f32 %v1134
      %vm1141 = vmor %vm1139, %vm1140
      %v1142 = vsel %vm1141, %v1134, %v1138
      %v1143 = vand.u32 2147483647, %v1133
      %vm1144 = vcmp.eq.f32.partialorder %v1143, 8.507059e+37
      %v1145 = vand.u32 %v1133, 2147483648
      %v1146 = vor.u32 1.1754944e-38, %v1145
      %v1147 = vsel %vm1144, %v1146, %v1142
      %v1148 = vmul.f32 %v1123, %v1147
      %v1149 = vmin.f32 %v1148, 1.0
      %v1150 = vmax.f32 %v1149, -1.0
      %v1151 = vadd.f32 %v1150, 1.0
      %v1152 = vmul.f32 %v1109, %v1151
      %v1153 = vpack.c.bf16 %v1152, %v1152
      %v1154 = vld [vmem:[%s632] sm:$0xf]
      %v1155 = vld [vmem:[%s632 + $0x4] sm:$0xf]
      %v1156 = vld [vmem:[%s632 + $0x8] sm:$0xf]
      %v1157 = vld [vmem:[%s632 + $0xc] sm:$0xf]
      %v1158 = vld [vmem:[%s632 + $0x10] sm:$0xf]
      %v1159 = vld [vmem:[%s632 + $0x14] sm:$0xf]
      %v1160 = vld [vmem:[%s632 + $0x18] sm:$0xf]
      %v1161 = vld [vmem:[%s632 + $0x1c] sm:$0xf]
      %v1162 = vld [vmem:[%s632 + $0x20] sm:$0xf]
      %v1163 = vld [vmem:[%s632 + $0x24] sm:$0xf]
      %v1164 = vld [vmem:[%s632 + $0x28] sm:$0xf]
      %v1165 = vld [vmem:[%s632 + $0x2c] sm:$0xf]
      %v1166 = vld [vmem:[%s632 + $0x30] sm:$0xf]
      %v1167 = vld [vmem:[%s632 + $0x34] sm:$0xf]
      %v1168 = vld [vmem:[%s632 + $0x38] sm:$0xf]
      %v1169 = vld [vmem:[%s632 + $0x3c] sm:$0xf]
      %v1170 = vld [vmem:[%s635] sm:$0x1]
      %v1172 = vperm.slane %v1170, 0
      %v1190 = vunpack.c.l.b16 %v1154
      %v1191 = vunpack.c.l.b16 %v1155
      %v1192 = vunpack.c.l.b16 %v1156
      %v1193 = vunpack.c.l.b16 %v1157
      %v1194 = vunpack.c.l.b16 %v1158
      %v1195 = vunpack.c.l.b16 %v1159
      %v1196 = vunpack.c.l.b16 %v1160
      %v1197 = vunpack.c.l.b16 %v1161
      %v1198 = vunpack.c.l.b16 %v1162
      %v1199 = vunpack.c.l.b16 %v1163
      %v1200 = vunpack.c.l.b16 %v1164
      %v1201 = vunpack.c.l.b16 %v1165
      %v1202 = vunpack.c.l.b16 %v1166
      %v1203 = vunpack.c.l.b16 %v1167
      %v1204 = vunpack.c.l.b16 %v1168
      %v1205 = vunpack.c.l.b16 %v1169
      %v1206 = vpack.c.b16 %v1191, %v1190
      %v1207 = vpack.c.b16 %v1193, %v1192
      %v1208 = vpack.c.b16 %v1195, %v1194
      %v1209 = vpack.c.b16 %v1197, %v1196
      %v1210 = vpack.c.b16 %v1199, %v1198
      %v1211 = vpack.c.b16 %v1201, %v1200
      %v1212 = vpack.c.b16 %v1203, %v1202
      %v1213 = vpack.c.b16 %v1205, %v1204
      %1222 = vmatpush.bf16.msra.mxu0 %v1213
      %1223 = vmatpush.bf16.msra.mxu0 %v1212
      %1224 = vmatpush.bf16.msra.mxu0 %v1211
      %1225 = vmatpush.bf16.msra.mxu0 %v1210
      %1226 = vmatpush.bf16.msra.mxu0 %v1209
      %1227 = vmatpush.bf16.msra.mxu0 %v1208
      %1228 = vmatpush.bf16.msra.mxu0 %v1207
      %1229 = vmatpush.bf16.msra.mxu0 %v1206
      %1230 = vmatmul.bf16.gmra.mxu0 %v1153
      %v1231 = vpop.f32.mrf.mxu0
      %v1232 = vadd.f32 %v1172, %v1231
      %v1233 = vpop.f32.mrf.mxu0
      %1234 = vdwg.mxu0
      %v1235 = vadd.f32 %v1039, %v1232
      %1236 = vst.msk [vmem:[%s639] sm:$0xff] %vm651, %v1235
      %p1237 = scmp.lt.s32.totalorder %s28, 1
      %s1238 = scalar_select %p1237, %s28, 1
      %s1239 = smul.addr %s1238, 8
      %s1240 = scalar_lea.vmem %s13, %s1239
      // Predicated region
      $region77: #{transformer_forward.2} parent=71 // pred_check
        %p1241 = pneg %p392
      $region78: #{transformer_forward.2} parent=71 // pred_check_branch
        %1243 = sbr.rel (%p1241) target = $region80
      $region79: #{transformer_forward.2} parent=71 // pred_region
        _
      $region80: #{transformer_forward.2} parent=71 // pred_fallthru
        _
    $region72: #{transformer_forward.2} parent=5 // pred_fallthru
      _
    %p1244 = scmp.le.s32.totalorder 2, %s19
    // Predicated region
    $region81: #{transformer_forward.2} parent=5 // pred_check
      %p1245 = pneg %p1244
    $region82: #{transformer_forward.2} parent=5 // pred_check_branch
      %1247 = sbr.rel (%p1245) target = $region84
    $region83: #{transformer_forward.2} parent=5 // pred_region
      %s1248 = ssub.s32 %s19, 2
      // Predicated region
      $region85: #{transformer_forward.2} parent=83 // pred_check
        %p1249 = pneg %p398
      $region86: #{transformer_forward.2} parent=83 // pred_check_branch
        %1251 = sbr.rel (%p1249) target = $region88
      $region87: #{transformer_forward.2} parent=83 // pred_region
        %p1252 = scmp.lt.s32.totalorder %s30, 1
        %s1253 = scalar_select %p1252, %s30, 1
        %s1254 = smul.addr %s1253, 8
        %s1255 = scalar_lea.vmem %s13, %s1254
      $region88: #{transformer_forward.2} parent=83 // pred_fallthru
        _
    $region84: #{transformer_forward.2} parent=5 // pred_fallthru
      _
  $region6: #{transformer_forward.2} parent=0 // loop_footer
    %s23 = sadd.s32 1, %s19
  $region7: #{transformer_forward.2} parent=0 // loop_footer_branch
    %18 = sbr.rel target = $region3
  $region8: #{transformer_forward.2} parent=0 // loop_exit
    _

</llo_original>
